<compile_context>
chip_gen: v6e
topology: v6e:2x2x1
jax: 0.10.0
libtpu: 0.0.40
codegen_flags: <defaults>
</compile_context>

<pallas_src>
import functools

import jax
import jax.numpy as jnp
from jax import lax
from jax.experimental import pallas as pl
from jax.experimental.pallas import tpu as pltpu


# ---------------------------------------------------------------------------
# Mish with a single transcendental (one exp + one reciprocal):
#   tanh(softplus(y)) = 1 - 2 / ((1 + e^y)^2 + 1)
# y is clamped before the exp so (1+e^y)^2 stays finite in f32; for y > 25 the
# factor is 1 to ~1e-22 so mish(y) ~= y anyway.
# (pl.reciprocal(..., approx=True) would trade a little accuracy for the EUP
#  fast path; kept exact here so the self-check below can stay tight.)
# ---------------------------------------------------------------------------
def _mish(y):
    t = jnp.exp(jnp.minimum(y, 25.0))
    u = 1.0 + t
    den = u * u + 1.0
    return y * (1.0 - 2.0 * pl.reciprocal(den, approx=False))


# ---------------------------------------------------------------------------
# Kernel 1: 1x1 conv (row-tiled matmul) + folded BN + Mish
#   x_ref:     (tm, C1)  row tile of the flattened activations (f32)
#   w_ref:     (C1, Cc)  bf16 weights (MXU operands)
#   scale_ref: (1, Cc)   BN scale  = gamma / sqrt(var + eps)
#   bias_ref:  (1, Cc)   BN bias   = beta - mean * scale
#   o_ref:     (tm, Cc)
# ---------------------------------------------------------------------------
def pw_conv_bn_mish_kernel(x_ref, w_ref, scale_ref, bias_ref, o_ref):
    acc = jnp.dot(x_ref[...].astype(jnp.bfloat16), w_ref[...],
                  preferred_element_type=jnp.float32)
    y = acc * scale_ref[...] + bias_ref[...]
    o_ref[...] = _mish(y).astype(o_ref.dtype)


def pw_conv_bn_mish(x_flat, w_bf16, scale, bias, row_tile=256):
    M, C1 = x_flat.shape
    Cc = w_bf16.shape[1]
    tm = max(8, min(row_tile, M))
    tm = (tm // 8) * 8                       # sublane-aligned row tile
    Mp = ((M + tm - 1) // tm) * tm
    if Mp != M:
        x_flat = jnp.pad(x_flat, ((0, Mp - M), (0, 0)))

    out = pl.pallas_call(
        pw_conv_bn_mish_kernel,
        grid=(Mp // tm,),
        in_specs=[
            pl.BlockSpec((tm, C1), lambda i: (i, 0)),
            pl.BlockSpec((C1, Cc), lambda i: (0, 0)),
            pl.BlockSpec((1, Cc), lambda i: (0, 0)),
            pl.BlockSpec((1, Cc), lambda i: (0, 0)),
        ],
        out_specs=pl.BlockSpec((tm, Cc), lambda i: (i, 0)),
        out_shape=jax.ShapeDtypeStruct((Mp, Cc), jnp.float32),
        compiler_params=pltpu.CompilerParams(
            dimension_semantics=("parallel",),
            vmem_limit_bytes=32 * 1024 * 1024,
        ),
    )(x_flat, w_bf16, scale, bias)
    return out[:M] if Mp != M else out


# ---------------------------------------------------------------------------
# Kernel 2: 5x5 depthwise conv + folded BN + Mish, lane-dense (H, W*C) layout.
#   x_ref:     (H, W*C)  one image, channels packed into lanes (l = w*C + c)
#   wm_ref:    (25, W*C) tap weights, W-tiled, with the dx edge mask folded in
#   scale_ref: (1, W*C)  BN scale, W-tiled
#   bias_ref:  (1, W*C)  BN bias,  W-tiled
#   o_ref:     (H, W*C)
# Taps are built with pltpu.roll (XLU) + row-halo masks; no padded HBM copy
# and no unaligned sublane slices.
# ---------------------------------------------------------------------------
def dw_conv_bn_mish_kernel(x_ref, wm_ref, scale_ref, bias_ref, o_ref, *, C):
    H, L = x_ref.shape
    x = x_ref[...].astype(jnp.float32)
    wm = wm_ref[...]                                   # hoisted: load once
    h_idx = lax.broadcasted_iota(jnp.int32, (H, 1), 0)

    acc = jnp.zeros((H, L), jnp.float32)
    for ky in range(5):
        dy = ky - 2
        if dy == 0:
            x_dy = x
        else:
            # x_dy[h, l] = x[h + dy, l]  (zero outside [0, H))
            x_dy = pltpu.roll(x, shift=(-dy) % H, axis=0)
            valid = jnp.logical_and(h_idx + dy >= 0, h_idx + dy < H)
            x_dy = jnp.where(valid, x_dy, 0.0)
        for kx in range(5):
            dx = kx - 2
            # x_tap[h, w*C + c] = x[h + dy, (w + dx)*C + c]; the W-edge mask
            # is already folded into wm, so wrapped lanes get zero weight.
            x_tap = x_dy if dx == 0 else pltpu.roll(x_dy, shift=(-dx * C) % L, axis=1)
            acc = acc + x_tap * wm[ky * 5 + kx]

    y = acc * scale_ref[...] + bias_ref[...]
    o_ref[...] = _mish(y).astype(o_ref.dtype)


def dw_conv_bn_mish(x_rows, wm, scale_l, bias_l, C):
    B, H, L = x_rows.shape
    kernel = functools.partial(dw_conv_bn_mish_kernel, C=C)
    return pl.pallas_call(
        kernel,
        grid=(B,),
        in_specs=[
            pl.BlockSpec((None, H, L), lambda b: (b, 0, 0)),
            pl.BlockSpec((25, L), lambda b: (0, 0)),
            pl.BlockSpec((1, L), lambda b: (0, 0)),
            pl.BlockSpec((1, L), lambda b: (0, 0)),
        ],
        out_specs=pl.BlockSpec((None, H, L), lambda b: (b, 0, 0)),
        out_shape=jax.ShapeDtypeStruct((B, H, L), jnp.float32),
        compiler_params=pltpu.CompilerParams(
            dimension_semantics=("parallel",),
            vmem_limit_bytes=32 * 1024 * 1024,
        ),
    )(x_rows, wm, scale_l, bias_l)


# ---------------------------------------------------------------------------
# Parameter preparation (one-time):
#   * fold the channel shuffle into a channel permutation of cv1/cv2 params
#     (valid whenever c_ is even; otherwise fall back to the strided shuffle),
#   * build W-tiled depthwise weights with the dx edge mask folded in,
#   * cast the 1x1 weights to bf16 for the MXU.
# ---------------------------------------------------------------------------
def prepare_gsconv_params(w1, scale1, bias1, w2, scale2, bias2, W):
    C1, c_ = w1.shape
    if c_ % 2 == 0:
        perm = jnp.concatenate([jnp.arange(0, c_, 2), jnp.arange(1, c_, 2)])
        w1 = w1[:, perm]
        scale1 = scale1[perm]
        bias1 = bias1[perm]
        w2 = w2[:, perm]
        scale2 = scale2[perm]
        bias2 = bias2[perm]

    w_pos = jnp.arange(W)
    rows = []
    for ky in range(5):
        for kx in range(5):
            dx = kx - 2
            valid_w = ((w_pos + dx >= 0) & (w_pos + dx < W)).astype(w2.dtype)  # (W,)
            rows.append((valid_w[:, None] * w2[ky * 5 + kx][None, :]).reshape(W * c_))
    wm = jnp.stack(rows)                                   # (25, W*c_)

    return dict(
        w1=w1.astype(jnp.bfloat16),
        scale1=scale1.reshape(1, c_),
        bias1=bias1.reshape(1, c_),
        wm=wm,
        scale2=jnp.tile(scale2, W).reshape(1, W * c_),
        bias2=jnp.tile(bias2, W).reshape(1, W * c_),
    )


def fold_bn(gamma, beta, mean, var, eps=1e-5):
    scale = gamma / jnp.sqrt(var + eps)
    bias = beta - mean * scale
    return scale, bias


# ---------------------------------------------------------------------------
# GSConv forward (NCHW in / NCHW out, matching the PyTorch module)
# ---------------------------------------------------------------------------
@jax.jit
def gsconv_forward(x_nchw, prep):
    B, C1, H, W = x_nchw.shape
    c_ = prep["scale1"].shape[1]

    x = jnp.transpose(x_nchw, (0, 2, 3, 1)).reshape(B * H * W, C1)

    # cv1: 1x1 conv + BN + Mish  (row-tiled MXU matmul)
    x1_flat = pw_conv_bn_mish(x, prep["w1"], prep["scale1"], prep["bias1"])

    # cv2: depthwise 5x5 + BN + Mish on the lane-dense (H, W*c_) slab
    # (the reshapes below are contiguous, layout-preserving -> free in XLA)
    x1_rows = x1_flat.reshape(B, H, W * c_)
    x2b_rows = dw_conv_bn_mish(x1_rows, prep["wm"], prep["scale2"], prep["bias2"], c_)

    x1 = x1_flat.reshape(B, H, W, c_)
    x2b = x2b_rows.reshape(B, H, W, c_)

    # channel shuffle: with the permutation folded into the params the result
    # is 4 contiguous channel chunks (no stride-2 lane gathers).
    if c_ % 2 == 0:
        h = c_ // 2
        out_nhwc = jnp.concatenate(
            [x1[..., :h], x2b[..., :h], x1[..., h:], x2b[..., h:]], axis=-1)
    else:
        x2 = jnp.concatenate([x1, x2b], axis=-1)
        out_nhwc = jnp.concatenate([x2[..., 0::2], x2[..., 1::2]], axis=-1)

    return jnp.transpose(out_nhwc, (0, 3, 1, 2))


# ---------------------------------------------------------------------------
# Pure-JAX reference (direct port of the PyTorch module, unpermuted params)
# ---------------------------------------------------------------------------
def _mish_ref(y):
    sp = jnp.maximum(y, 0.0) + jnp.log1p(jnp.exp(-jnp.abs(y)))
    return y * jnp.tanh(sp)


def gsconv_reference(x_nchw, w1, scale1, bias1, w2, scale2, bias2):
    B, C1, H, W = x_nchw.shape
    c_ = w1.shape[1]
    x = jnp.transpose(x_nchw, (0, 2, 3, 1))

    pre = jnp.dot(x.reshape(-1, C1).astype(jnp.bfloat16), w1.astype(jnp.bfloat16),
                  preferred_element_type=jnp.float32).reshape(B, H, W, c_)
    x1 = _mish_ref(pre * scale1 + bias1)

    xp = jnp.pad(x1, ((0, 0), (2, 2), (2, 2), (0, 0)))
    acc = jnp.zeros_like(x1)
    for ky in range(5):
        for kx in range(5):
            acc = acc + xp[:, ky:ky + H, kx:kx + W, :] * w2[ky * 5 + kx]
    x2b = _mish_ref(acc * scale2 + bias2)

    x2 = jnp.concatenate([x1, x2b], axis=-1)
    out_nhwc = jnp.concatenate([x2[..., 0::2], x2[..., 1::2]], axis=-1)
    return jnp.transpose(out_nhwc, (0, 3, 1, 2))


if __name__ == "__main__":
    # small shapes; W * c_ = 128 keeps the depthwise slab exactly lane-dense.
    B, C1, C2, H, W = 2, 8, 16, 16, 16
    c_ = C2 // 2

    key = jax.random.PRNGKey(0)
    keys = jax.random.split(key, 11)

    x = jax.random.normal(keys[0], (B, C1, H, W), jnp.float32)

    # cv1 conv weight: torch (c_, C1, 1, 1) -> stored (C1, c_) for matmul
    w1 = 0.5 * jax.random.normal(keys[1], (C1, c_), jnp.float32)
    # cv2 depthwise weight: torch (c_, 1, 5, 5) -> stored (25, c_) tap-major
    w2 = 0.2 * jax.random.normal(keys[2], (25, c_), jnp.float32)

    # deterministic synthetic eval-mode BatchNorm parameters
    gamma1 = 1.0 + 0.1 * jax.random.normal(keys[3], (c_,), jnp.float32)
    beta1 = 0.1 * jax.random.normal(keys[4], (c_,), jnp.float32)
    mean1 = 0.1 * jax.random.normal(keys[5], (c_,), jnp.float32)
    var1 = 1.0 + 0.1 * jax.random.uniform(keys[6], (c_,), jnp.float32)

    gamma2 = 1.0 + 0.1 * jax.random.normal(keys[7], (c_,), jnp.float32)
    beta2 = 0.1 * jax.random.normal(keys[8], (c_,), jnp.float32)
    mean2 = 0.1 * jax.random.normal(keys[9], (c_,), jnp.float32)
    var2 = 1.0 + 0.1 * jax.random.uniform(keys[10], (c_,), jnp.float32)

    scale1, bias1 = fold_bn(gamma1, beta1, mean1, var1)
    scale2, bias2 = fold_bn(gamma2, beta2, mean2, var2)

    prep = prepare_gsconv_params(w1, scale1, bias1, w2, scale2, bias2, W)

    out = gsconv_forward(x, prep)
    out = jax.block_until_ready(out)

    assert out.shape == (B, C2, H, W), out.shape
    assert out.dtype == jnp.float32, out.dtype

    ref = gsconv_reference(x, w1, scale1, bias1, w2, scale2, bias2)
    err = float(jnp.max(jnp.abs(out - ref.astype(out.dtype))))
    assert err < 1e-2, f"max abs error vs reference: {err}"

    print("KERNEL_OK")
</pallas_src>

<mosaic_0001>
module attributes {stable_mosaic.version = 11 : i64} {
  func.func @pw_conv_bn_mish_kernel(%arg0: i32, %arg1: memref<256x8xf32, #tpu.memory_space<vmem>>, %arg2: memref<8x8xbf16, #tpu.memory_space<vmem>>, %arg3: memref<1x8xf32, #tpu.memory_space<vmem>>, %arg4: memref<1x8xf32, #tpu.memory_space<vmem>>, %arg5: memref<256x8xf32, #tpu.memory_space<vmem>>) attributes {dimension_semantics = [#tpu.dimension_semantics<parallel>], iteration_bounds = array<i64: 2>, scalar_prefetch = 0 : i64, scratch_operands = 0 : i64, tpu.core_type = #tpu.core_type<tc>, window_params = [{transform_indices = @transform_0, window_bounds = array<i64: 256, 8>}, {pipeline_mode = #tpu.pipeline_mode<synchronous>, transform_indices = @transform_1, window_bounds = array<i64: 8, 8>}, {pipeline_mode = #tpu.pipeline_mode<synchronous>, transform_indices = @transform_2, window_bounds = array<i64: 1, 8>}, {pipeline_mode = #tpu.pipeline_mode<synchronous>, transform_indices = @transform_3, window_bounds = array<i64: 1, 8>}, {transform_indices = @transform_4, window_bounds = array<i64: 256, 8>}]} {
    %c0 = arith.constant 0 : index
    %c0_0 = arith.constant 0 : index
    %0 = vector.load %arg1[%c0, %c0_0] : memref<256x8xf32, #tpu.memory_space<vmem>>, vector<256x8xf32>
    %1 = arith.truncf %0 : vector<256x8xf32> to vector<256x8xbf16>
    %c0_1 = arith.constant 0 : index
    %c0_2 = arith.constant 0 : index
    %2 = vector.load %arg2[%c0_1, %c0_2] : memref<8x8xbf16, #tpu.memory_space<vmem>>, vector<8x8xbf16>
    %cst = arith.constant dense<0.000000e+00> : vector<256x8xf32>
    %3 = tpu.matmul %1, %2, %cst {dimension_numbers = #tpu.dot_dimension_numbers<[1], [0], [0], [1], [0, 0, 1, 1], [], []>} : vector<256x8xbf16>, vector<8x8xbf16>, vector<256x8xf32> -> vector<256x8xf32>
    %c0_3 = arith.constant 0 : index
    %c0_4 = arith.constant 0 : index
    %4 = vector.load %arg3[%c0_3, %c0_4] : memref<1x8xf32, #tpu.memory_space<vmem>>, vector<1x8xf32>
    %5 = vector.broadcast %4 : vector<1x8xf32> to vector<256x8xf32>
    %6 = arith.mulf %3, %5 : vector<256x8xf32>
    %c0_5 = arith.constant 0 : index
    %c0_6 = arith.constant 0 : index
    %7 = vector.load %arg4[%c0_5, %c0_6] : memref<1x8xf32, #tpu.memory_space<vmem>>, vector<1x8xf32>
    %8 = vector.broadcast %7 : vector<1x8xf32> to vector<256x8xf32>
    %9 = arith.addf %6, %8 : vector<256x8xf32>
    %cst_7 = arith.constant 2.500000e+01 : f32
    %10 = vector.broadcast %cst_7 : f32 to vector<256x8xf32>
    %11 = arith.minimumf %9, %10 : vector<256x8xf32>
    %12 = math.exp %11 : vector<256x8xf32>
    %cst_8 = arith.constant 1.000000e+00 : f32
    %13 = vector.broadcast %cst_8 : f32 to vector<256x8xf32>
    %14 = arith.addf %13, %12 : vector<256x8xf32>
    %15 = arith.mulf %14, %14 : vector<256x8xf32>
    %cst_9 = arith.constant 1.000000e+00 : f32
    %16 = vector.broadcast %cst_9 : f32 to vector<256x8xf32>
    %17 = arith.addf %15, %16 : vector<256x8xf32>
    %18 = tpu.reciprocal %17 : vector<256x8xf32> -> vector<256x8xf32>
    %cst_10 = arith.constant 2.000000e+00 : f32
    %19 = vector.broadcast %cst_10 : f32 to vector<256x8xf32>
    %20 = arith.mulf %19, %18 : vector<256x8xf32>
    %cst_11 = arith.constant 1.000000e+00 : f32
    %21 = vector.broadcast %cst_11 : f32 to vector<256x8xf32>
    %22 = arith.subf %21, %20 : vector<256x8xf32>
    %23 = arith.mulf %9, %22 : vector<256x8xf32>
    %c0_12 = arith.constant 0 : index
    %c0_13 = arith.constant 0 : index
    %24 = vector.load %arg5[%c0_12, %c0_13] : memref<256x8xf32, #tpu.memory_space<vmem>>, vector<256x8xf32>
    tpu.vector_store %arg5[%c0_12, %c0_13], %23 {strides = array<i32>} : memref<256x8xf32, #tpu.memory_space<vmem>>, vector<256x8xf32>,
    return
  }
  func.func @transform_0(%arg0: i32) -> (i32, i32) {
    %c0_i32 = arith.constant 0 : i32
    %c0_i32_0 = arith.constant 0 : i32
    return %arg0, %c0_i32 : i32, i32
  }
  func.func @transform_1(%arg0: i32) -> (i32, i32) {
    %c0_i32 = arith.constant 0 : i32
    %c0_i32_0 = arith.constant 0 : i32
    %c0_i32_1 = arith.constant 0 : i32
    return %c0_i32, %c0_i32_0 : i32, i32
  }
  func.func @transform_2(%arg0: i32) -> (i32, i32) {
    %c0_i32 = arith.constant 0 : i32
    %c0_i32_0 = arith.constant 0 : i32
    %c0_i32_1 = arith.constant 0 : i32
    return %c0_i32, %c0_i32_0 : i32, i32
  }
  func.func @transform_3(%arg0: i32) -> (i32, i32) {
    %c0_i32 = arith.constant 0 : i32
    %c0_i32_0 = arith.constant 0 : i32
    %c0_i32_1 = arith.constant 0 : i32
    return %c0_i32, %c0_i32_0 : i32, i32
  }
  func.func @transform_4(%arg0: i32) -> (i32, i32) {
    %c0_i32 = arith.constant 0 : i32
    %c0_i32_0 = arith.constant 0 : i32
    return %arg0, %c0_i32 : i32, i32
  }
}

module attributes {stable_mosaic.version = 11 : i64} {
  func.func @dw_conv_bn_mish_kernel(%arg0: i32, %arg1: memref<1x16x128xf32, #tpu.memory_space<vmem>>, %arg2: memref<25x128xf32, #tpu.memory_space<vmem>>, %arg3: memref<1x128xf32, #tpu.memory_space<vmem>>, %arg4: memref<1x128xf32, #tpu.memory_space<vmem>>, %arg5: memref<1x16x128xf32, #tpu.memory_space<vmem>>) attributes {dimension_semantics = [#tpu.dimension_semantics<parallel>], iteration_bounds = array<i64: 2>, scalar_prefetch = 0 : i64, scratch_operands = 0 : i64, tpu.core_type = #tpu.core_type<tc>, window_params = [{transform_indices = @transform_0, window_bounds = array<i64: 1, 16, 128>}, {pipeline_mode = #tpu.pipeline_mode<synchronous>, transform_indices = @transform_1, window_bounds = array<i64: 25, 128>}, {pipeline_mode = #tpu.pipeline_mode<synchronous>, transform_indices = @transform_2, window_bounds = array<i64: 1, 128>}, {pipeline_mode = #tpu.pipeline_mode<synchronous>, transform_indices = @transform_3, window_bounds = array<i64: 1, 128>}, {transform_indices = @transform_4, window_bounds = array<i64: 1, 16, 128>}]} {
    %c0 = arith.constant 0 : index
    %c0_0 = arith.constant 0 : index
    %c0_1 = arith.constant 0 : index
    %0 = vector.load %arg1[%c0, %c0_0, %c0_1] : memref<1x16x128xf32, #tpu.memory_space<vmem>>, vector<1x16x128xf32>
    %1 = vector.shape_cast %0 : vector<1x16x128xf32> to vector<16x128xf32>
    %c0_2 = arith.constant 0 : index
    %c0_3 = arith.constant 0 : index
    %2 = vector.load %arg2[%c0_2, %c0_3] : memref<25x128xf32, #tpu.memory_space<vmem>>, vector<25x128xf32>
    %3 = tpu.iota {dimensions = array<i32: 0>} : vector<16x1xi32>
    %cst = arith.constant 0.000000e+00 : f32
    %4 = vector.broadcast %cst : f32 to vector<16x128xf32>
    %c2_i32 = arith.constant 2 : i32
    %5 = tpu.dynamic_rotate %1 by %c2_i32 dim 0 : vector<16x128xf32>, i32 -> vector<16x128xf32>
    %c-2_i32 = arith.constant -2 : i32
    %6 = vector.broadcast %c-2_i32 : i32 to vector<16x1xi32>
    %7 = arith.addi %3, %6 : vector<16x1xi32>
    %c0_i32 = arith.constant 0 : i32
    %8 = vector.broadcast %c0_i32 : i32 to vector<16x1xi32>
    %9 = arith.cmpi sge, %7, %8 : vector<16x1xi32>
    %c-2_i32_4 = arith.constant -2 : i32
    %10 = vector.broadcast %c-2_i32_4 : i32 to vector<16x1xi32>
    %11 = arith.addi %3, %10 : vector<16x1xi32>
    %c16_i32 = arith.constant 16 : i32
    %12 = vector.broadcast %c16_i32 : i32 to vector<16x1xi32>
    %13 = arith.cmpi slt, %11, %12 : vector<16x1xi32>
    %14 = arith.andi %9, %13 : vector<16x1xi1>
    %cst_5 = arith.constant 0.000000e+00 : f32
    %15 = vector.shape_cast %14 : vector<16x1xi1> to vector<16x1xi1>
    %16 = vector.broadcast %15 : vector<16x1xi1> to vector<16x128xi1>
    %17 = vector.broadcast %cst_5 : f32 to vector<16x128xf32>
    %18 = arith.select %16, %5, %17 : vector<16x128xi1>, vector<16x128xf32>
    %c16_i32_6 = arith.constant 16 : i32
    %19 = tpu.dynamic_rotate %18 by %c16_i32_6 dim 1 : vector<16x128xf32>, i32 -> vector<16x128xf32>
    %20 = vector.extract_strided_slice %2 {offsets = [0, 0], sizes = [1, 128], strides = [1, 1]} : vector<25x128xf32> to vector<1x128xf32>
    %21 = vector.shape_cast %20 : vector<1x128xf32> to vector<128xf32>
    %22 = vector.shape_cast %21 : vector<128xf32> to vector<1x128xf32>
    %23 = vector.broadcast %22 : vector<1x128xf32> to vector<16x128xf32>
    %24 = arith.mulf %19, %23 : vector<16x128xf32>
    %25 = arith.addf %4, %24 : vector<16x128xf32>
    %c8_i32 = arith.constant 8 : i32
    %26 = tpu.dynamic_rotate %18 by %c8_i32 dim 1 : vector<16x128xf32>, i32 -> vector<16x128xf32>
    %27 = vector.extract_strided_slice %2 {offsets = [1, 0], sizes = [1, 128], strides = [1, 1]} : vector<25x128xf32> to vector<1x128xf32>
    %28 = vector.shape_cast %27 : vector<1x128xf32> to vector<128xf32>
    %29 = vector.shape_cast %28 : vector<128xf32> to vector<1x128xf32>
    %30 = vector.broadcast %29 : vector<1x128xf32> to vector<16x128xf32>
    %31 = arith.mulf %26, %30 : vector<16x128xf32>
    %32 = arith.addf %25, %31 : vector<16x128xf32>
    %33 = vector.extract_strided_slice %2 {offsets = [2, 0], sizes = [1, 128], strides = [1, 1]} : vector<25x128xf32> to vector<1x128xf32>
    %34 = vector.shape_cast %33 : vector<1x128xf32> to vector<128xf32>
    %35 = vector.shape_cast %34 : vector<128xf32> to vector<1x128xf32>
    %36 = vector.broadcast %35 : vector<1x128xf32> to vector<16x128xf32>
    %37 = arith.mulf %18, %36 : vector<16x128xf32>
    %38 = arith.addf %32, %37 : vector<16x128xf32>
    %c120_i32 = arith.constant 120 : i32
    %39 = tpu.dynamic_rotate %18 by %c120_i32 dim 1 : vector<16x128xf32>, i32 -> vector<16x128xf32>
    %40 = vector.extract_strided_slice %2 {offsets = [3, 0], sizes = [1, 128], strides = [1, 1]} : vector<25x128xf32> to vector<1x128xf32>
    %41 = vector.shape_cast %40 : vector<1x128xf32> to vector<128xf32>
    %42 = vector.shape_cast %41 : vector<128xf32> to vector<1x128xf32>
    %43 = vector.broadcast %42 : vector<1x128xf32> to vector<16x128xf32>
    %44 = arith.mulf %39, %43 : vector<16x128xf32>
    %45 = arith.addf %38, %44 : vector<16x128xf32>
    %c112_i32 = arith.constant 112 : i32
    %46 = tpu.dynamic_rotate %18 by %c112_i32 dim 1 : vector<16x128xf32>, i32 -> vector<16x128xf32>
    %47 = vector.extract_strided_slice %2 {offsets = [4, 0], sizes = [1, 128], strides = [1, 1]} : vector<25x128xf32> to vector<1x128xf32>
    %48 = vector.shape_cast %47 : vector<1x128xf32> to vector<128xf32>
    %49 = vector.shape_cast %48 : vector<128xf32> to vector<1x128xf32>
    %50 = vector.broadcast %49 : vector<1x128xf32> to vector<16x128xf32>
    %51 = arith.mulf %46, %50 : vector<16x128xf32>
    %52 = arith.addf %45, %51 : vector<16x128xf32>
    %c1_i32 = arith.constant 1 : i32
    %53 = tpu.dynamic_rotate %1 by %c1_i32 dim 0 : vector<16x128xf32>, i32 -> vector<16x128xf32>
    %c-1_i32 = arith.constant -1 : i32
    %54 = vector.broadcast %c-1_i32 : i32 to vector<16x1xi32>
    %55 = arith.addi %3, %54 : vector<16x1xi32>
    %c0_i32_7 = arith.constant 0 : i32
    %56 = vector.broadcast %c0_i32_7 : i32 to vector<16x1xi32>
    %57 = arith.cmpi sge, %55, %56 : vector<16x1xi32>
    %c-1_i32_8 = arith.constant -1 : i32
    %58 = vector.broadcast %c-1_i32_8 : i32 to vector<16x1xi32>
    %59 = arith.addi %3, %58 : vector<16x1xi32>
    %c16_i32_9 = arith.constant 16 : i32
    %60 = vector.broadcast %c16_i32_9 : i32 to vector<16x1xi32>
    %61 = arith.cmpi slt, %59, %60 : vector<16x1xi32>
    %62 = arith.andi %57, %61 : vector<16x1xi1>
    %cst_10 = arith.constant 0.000000e+00 : f32
    %63 = vector.shape_cast %62 : vector<16x1xi1> to vector<16x1xi1>
    %64 = vector.broadcast %63 : vector<16x1xi1> to vector<16x128xi1>
    %65 = vector.broadcast %cst_10 : f32 to vector<16x128xf32>
    %66 = arith.select %64, %53, %65 : vector<16x128xi1>, vector<16x128xf32>
    %c16_i32_11 = arith.constant 16 : i32
    %67 = tpu.dynamic_rotate %66 by %c16_i32_11 dim 1 : vector<16x128xf32>, i32 -> vector<16x128xf32>
    %68 = vector.extract_strided_slice %2 {offsets = [5, 0], sizes = [1, 128], strides = [1, 1]} : vector<25x128xf32> to vector<1x128xf32>
    %69 = vector.shape_cast %68 : vector<1x128xf32> to vector<128xf32>
    %70 = vector.shape_cast %69 : vector<128xf32> to vector<1x128xf32>
    %71 = vector.broadcast %70 : vector<1x128xf32> to vector<16x128xf32>
    %72 = arith.mulf %67, %71 : vector<16x128xf32>
    %73 = arith.addf %52, %72 : vector<16x128xf32>
    %c8_i32_12 = arith.constant 8 : i32
    %74 = tpu.dynamic_rotate %66 by %c8_i32_12 dim 1 : vector<16x128xf32>, i32 -> vector<16x128xf32>
    %75 = vector.extract_strided_slice %2 {offsets = [6, 0], sizes = [1, 128], strides = [1, 1]} : vector<25x128xf32> to vector<1x128xf32>
    %76 = vector.shape_cast %75 : vector<1x128xf32> to vector<128xf32>
    %77 = vector.shape_cast %76 : vector<128xf32> to vector<1x128xf32>
    %78 = vector.broadcast %77 : vector<1x128xf32> to vector<16x128xf32>
    %79 = arith.mulf %74, %78 : vector<16x128xf32>
    %80 = arith.addf %73, %79 : vector<16x128xf32>
    %81 = vector.extract_strided_slice %2 {offsets = [7, 0], sizes = [1, 128], strides = [1, 1]} : vector<25x128xf32> to vector<1x128xf32>
    %82 = vector.shape_cast %81 : vector<1x128xf32> to vector<128xf32>
    %83 = vector.shape_cast %82 : vector<128xf32> to vector<1x128xf32>
    %84 = vector.broadcast %83 : vector<1x128xf32> to vector<16x128xf32>
    %85 = arith.mulf %66, %84 : vector<16x128xf32>
    %86 = arith.addf %80, %85 : vector<16x128xf32>
    %c120_i32_13 = arith.constant 120 : i32
    %87 = tpu.dynamic_rotate %66 by %c120_i32_13 dim 1 : vector<16x128xf32>, i32 -> vector<16x128xf32>
    %88 = vector.extract_strided_slice %2 {offsets = [8, 0], sizes = [1, 128], strides = [1, 1]} : vector<25x128xf32> to vector<1x128xf32>
    %89 = vector.shape_cast %88 : vector<1x128xf32> to vector<128xf32>
    %90 = vector.shape_cast %89 : vector<128xf32> to vector<1x128xf32>
    %91 = vector.broadcast %90 : vector<1x128xf32> to vector<16x128xf32>
    %92 = arith.mulf %87, %91 : vector<16x128xf32>
    %93 = arith.addf %86, %92 : vector<16x128xf32>
    %c112_i32_14 = arith.constant 112 : i32
    %94 = tpu.dynamic_rotate %66 by %c112_i32_14 dim 1 : vector<16x128xf32>, i32 -> vector<16x128xf32>
    %95 = vector.extract_strided_slice %2 {offsets = [9, 0], sizes = [1, 128], strides = [1, 1]} : vector<25x128xf32> to vector<1x128xf32>
    %96 = vector.shape_cast %95 : vector<1x128xf32> to vector<128xf32>
    %97 = vector.shape_cast %96 : vector<128xf32> to vector<1x128xf32>
    %98 = vector.broadcast %97 : vector<1x128xf32> to vector<16x128xf32>
    %99 = arith.mulf %94, %98 : vector<16x128xf32>
    %100 = arith.addf %93, %99 : vector<16x128xf32>
    %c16_i32_15 = arith.constant 16 : i32
    %101 = tpu.dynamic_rotate %1 by %c16_i32_15 dim 1 : vector<16x128xf32>, i32 -> vector<16x128xf32>
    %102 = vector.extract_strided_slice %2 {offsets = [10, 0], sizes = [1, 128], strides = [1, 1]} : vector<25x128xf32> to vector<1x128xf32>
    %103 = vector.shape_cast %102 : vector<1x128xf32> to vector<128xf32>
    %104 = vector.shape_cast %103 : vector<128xf32> to vector<1x128xf32>
    %105 = vector.broadcast %104 : vector<1x128xf32> to vector<16x128xf32>
    %106 = arith.mulf %101, %105 : vector<16x128xf32>
    %107 = arith.addf %100, %106 : vector<16x128xf32>
    %c8_i32_16 = arith.constant 8 : i32
    %108 = tpu.dynamic_rotate %1 by %c8_i32_16 dim 1 : vector<16x128xf32>, i32 -> vector<16x128xf32>
    %109 = vector.extract_strided_slice %2 {offsets = [11, 0], sizes = [1, 128], strides = [1, 1]} : vector<25x128xf32> to vector<1x128xf32>
    %110 = vector.shape_cast %109 : vector<1x128xf32> to vector<128xf32>
    %111 = vector.shape_cast %110 : vector<128xf32> to vector<1x128xf32>
    %112 = vector.broadcast %111 : vector<1x128xf32> to vector<16x128xf32>
    %113 = arith.mulf %108, %112 : vector<16x128xf32>
    %114 = arith.addf %107, %113 : vector<16x128xf32>
    %115 = vector.extract_strided_slice %2 {offsets = [12, 0], sizes = [1, 128], strides = [1, 1]} : vector<25x128xf32> to vector<1x128xf32>
    %116 = vector.shape_cast %115 : vector<1x128xf32> to vector<128xf32>
    %117 = vector.shape_cast %116 : vector<128xf32> to vector<1x128xf32>
    %118 = vector.broadcast %117 : vector<1x128xf32> to vector<16x128xf32>
    %119 = arith.mulf %1, %118 : vector<16x128xf32>
    %120 = arith.addf %114, %119 : vector<16x128xf32>
    %c120_i32_17 = arith.constant 120 : i32
    %121 = tpu.dynamic_rotate %1 by %c120_i32_17 dim 1 : vector<16x128xf32>, i32 -> vector<16x128xf32>
    %122 = vector.extract_strided_slice %2 {offsets = [13, 0], sizes = [1, 128], strides = [1, 1]} : vector<25x128xf32> to vector<1x128xf32>
    %123 = vector.shape_cast %122 : vector<1x128xf32> to vector<128xf32>
    %124 = vector.shape_cast %123 : vector<128xf32> to vector<1x128xf32>
    %125 = vector.broadcast %124 : vector<1x128xf32> to vector<16x128xf32>
    %126 = arith.mulf %121, %125 : vector<16x128xf32>
    %127 = arith.addf %120, %126 : vector<16x128xf32>
    %c112_i32_18 = arith.constant 112 : i32
    %128 = tpu.dynamic_rotate %1 by %c112_i32_18 dim 1 : vector<16x128xf32>, i32 -> vector<16x128xf32>
    %129 = vector.extract_strided_slice %2 {offsets = [14, 0], sizes = [1, 128], strides = [1, 1]} : vector<25x128xf32> to vector<1x128xf32>
    %130 = vector.shape_cast %129 : vector<1x128xf32> to vector<128xf32>
    %131 = vector.shape_cast %130 : vector<128xf32> to vector<1x128xf32>
    %132 = vector.broadcast %131 : vector<1x128xf32> to vector<16x128xf32>
    %133 = arith.mulf %128, %132 : vector<16x128xf32>
    %134 = arith.addf %127, %133 : vector<16x128xf32>
    %c15_i32 = arith.constant 15 : i32
    %135 = tpu.dynamic_rotate %1 by %c15_i32 dim 0 : vector<16x128xf32>, i32 -> vector<16x128xf32>
    %c1_i32_19 = arith.constant 1 : i32
    %136 = vector.broadcast %c1_i32_19 : i32 to vector<16x1xi32>
    %137 = arith.addi %3, %136 : vector<16x1xi32>
    %c0_i32_20 = arith.constant 0 : i32
    %138 = vector.broadcast %c0_i32_20 : i32 to vector<16x1xi32>
    %139 = arith.cmpi sge, %137, %138 : vector<16x1xi32>
    %c1_i32_21 = arith.constant 1 : i32
    %140 = vector.broadcast %c1_i32_21 : i32 to vector<16x1xi32>
    %141 = arith.addi %3, %140 : vector<16x1xi32>
    %c16_i32_22 = arith.constant 16 : i32
    %142 = vector.broadcast %c16_i32_22 : i32 to vector<16x1xi32>
    %143 = arith.cmpi slt, %141, %142 : vector<16x1xi32>
    %144 = arith.andi %139, %143 : vector<16x1xi1>
    %cst_23 = arith.constant 0.000000e+00 : f32
    %145 = vector.shape_cast %144 : vector<16x1xi1> to vector<16x1xi1>
    %146 = vector.broadcast %145 : vector<16x1xi1> to vector<16x128xi1>
    %147 = vector.broadcast %cst_23 : f32 to vector<16x128xf32>
    %148 = arith.select %146, %135, %147 : vector<16x128xi1>, vector<16x128xf32>
    %c16_i32_24 = arith.constant 16 : i32
    %149 = tpu.dynamic_rotate %148 by %c16_i32_24 dim 1 : vector<16x128xf32>, i32 -> vector<16x128xf32>
    %150 = vector.extract_strided_slice %2 {offsets = [15, 0], sizes = [1, 128], strides = [1, 1]} : vector<25x128xf32> to vector<1x128xf32>
    %151 = vector.shape_cast %150 : vector<1x128xf32> to vector<128xf32>
    %152 = vector.shape_cast %151 : vector<128xf32> to vector<1x128xf32>
    %153 = vector.broadcast %152 : vector<1x128xf32> to vector<16x128xf32>
    %154 = arith.mulf %149, %153 : vector<16x128xf32>
    %155 = arith.addf %134, %154 : vector<16x128xf32>
    %c8_i32_25 = arith.constant 8 : i32
    %156 = tpu.dynamic_rotate %148 by %c8_i32_25 dim 1 : vector<16x128xf32>, i32 -> vector<16x128xf32>
    %157 = vector.extract_strided_slice %2 {offsets = [16, 0], sizes = [1, 128], strides = [1, 1]} : vector<25x128xf32> to vector<1x128xf32>
    %158 = vector.shape_cast %157 : vector<1x128xf32> to vector<128xf32>
    %159 = vector.shape_cast %158 : vector<128xf32> to vector<1x128xf32>
    %160 = vector.broadcast %159 : vector<1x128xf32> to vector<16x128xf32>
    %161 = arith.mulf %156, %160 : vector<16x128xf32>
    %162 = arith.addf %155, %161 : vector<16x128xf32>
    %163 = vector.extract_strided_slice %2 {offsets = [17, 0], sizes = [1, 128], strides = [1, 1]} : vector<25x128xf32> to vector<1x128xf32>
    %164 = vector.shape_cast %163 : vector<1x128xf32> to vector<128xf32>
    %165 = vector.shape_cast %164 : vector<128xf32> to vector<1x128xf32>
    %166 = vector.broadcast %165 : vector<1x128xf32> to vector<16x128xf32>
    %167 = arith.mulf %148, %166 : vector<16x128xf32>
    %168 = arith.addf %162, %167 : vector<16x128xf32>
    %c120_i32_26 = arith.constant 120 : i32
    %169 = tpu.dynamic_rotate %148 by %c120_i32_26 dim 1 : vector<16x128xf32>, i32 -> vector<16x128xf32>
    %170 = vector.extract_strided_slice %2 {offsets = [18, 0], sizes = [1, 128], strides = [1, 1]} : vector<25x128xf32> to vector<1x128xf32>
    %171 = vector.shape_cast %170 : vector<1x128xf32> to vector<128xf32>
    %172 = vector.shape_cast %171 : vector<128xf32> to vector<1x128xf32>
    %173 = vector.broadcast %172 : vector<1x128xf32> to vector<16x128xf32>
    %174 = arith.mulf %169, %173 : vector<16x128xf32>
    %175 = arith.addf %168, %174 : vector<16x128xf32>
    %c112_i32_27 = arith.constant 112 : i32
    %176 = tpu.dynamic_rotate %148 by %c112_i32_27 dim 1 : vector<16x128xf32>, i32 -> vector<16x128xf32>
    %177 = vector.extract_strided_slice %2 {offsets = [19, 0], sizes = [1, 128], strides = [1, 1]} : vector<25x128xf32> to vector<1x128xf32>
    %178 = vector.shape_cast %177 : vector<1x128xf32> to vector<128xf32>
    %179 = vector.shape_cast %178 : vector<128xf32> to vector<1x128xf32>
    %180 = vector.broadcast %179 : vector<1x128xf32> to vector<16x128xf32>
    %181 = arith.mulf %176, %180 : vector<16x128xf32>
    %182 = arith.addf %175, %181 : vector<16x128xf32>
    %c14_i32 = arith.constant 14 : i32
    %183 = tpu.dynamic_rotate %1 by %c14_i32 dim 0 : vector<16x128xf32>, i32 -> vector<16x128xf32>
    %c2_i32_28 = arith.constant 2 : i32
    %184 = vector.broadcast %c2_i32_28 : i32 to vector<16x1xi32>
    %185 = arith.addi %3, %184 : vector<16x1xi32>
    %c0_i32_29 = arith.constant 0 : i32
    %186 = vector.broadcast %c0_i32_29 : i32 to vector<16x1xi32>
    %187 = arith.cmpi sge, %185, %186 : vector<16x1xi32>
    %c2_i32_30 = arith.constant 2 : i32
    %188 = vector.broadcast %c2_i32_30 : i32 to vector<16x1xi32>
    %189 = arith.addi %3, %188 : vector<16x1xi32>
    %c16_i32_31 = arith.constant 16 : i32
    %190 = vector.broadcast %c16_i32_31 : i32 to vector<16x1xi32>
    %191 = arith.cmpi slt, %189, %190 : vector<16x1xi32>
    %192 = arith.andi %187, %191 : vector<16x1xi1>
    %cst_32 = arith.constant 0.000000e+00 : f32
    %193 = vector.shape_cast %192 : vector<16x1xi1> to vector<16x1xi1>
    %194 = vector.broadcast %193 : vector<16x1xi1> to vector<16x128xi1>
    %195 = vector.broadcast %cst_32 : f32 to vector<16x128xf32>
    %196 = arith.select %194, %183, %195 : vector<16x128xi1>, vector<16x128xf32>
    %c16_i32_33 = arith.constant 16 : i32
    %197 = tpu.dynamic_rotate %196 by %c16_i32_33 dim 1 : vector<16x128xf32>, i32 -> vector<16x128xf32>
    %198 = vector.extract_strided_slice %2 {offsets = [20, 0], sizes = [1, 128], strides = [1, 1]} : vector<25x128xf32> to vector<1x128xf32>
    %199 = vector.shape_cast %198 : vector<1x128xf32> to vector<128xf32>
    %200 = vector.shape_cast %199 : vector<128xf32> to vector<1x128xf32>
    %201 = vector.broadcast %200 : vector<1x128xf32> to vector<16x128xf32>
    %202 = arith.mulf %197, %201 : vector<16x128xf32>
    %203 = arith.addf %182, %202 : vector<16x128xf32>
    %c8_i32_34 = arith.constant 8 : i32
    %204 = tpu.dynamic_rotate %196 by %c8_i32_34 dim 1 : vector<16x128xf32>, i32 -> vector<16x128xf32>
    %205 = vector.extract_strided_slice %2 {offsets = [21, 0], sizes = [1, 128], strides = [1, 1]} : vector<25x128xf32> to vector<1x128xf32>
    %206 = vector.shape_cast %205 : vector<1x128xf32> to vector<128xf32>
    %207 = vector.shape_cast %206 : vector<128xf32> to vector<1x128xf32>
    %208 = vector.broadcast %207 : vector<1x128xf32> to vector<16x128xf32>
    %209 = arith.mulf %204, %208 : vector<16x128xf32>
    %210 = arith.addf %203, %209 : vector<16x128xf32>
    %211 = vector.extract_strided_slice %2 {offsets = [22, 0], sizes = [1, 128], strides = [1, 1]} : vector<25x128xf32> to vector<1x128xf32>
    %212 = vector.shape_cast %211 : vector<1x128xf32> to vector<128xf32>
    %213 = vector.shape_cast %212 : vector<128xf32> to vector<1x128xf32>
    %214 = vector.broadcast %213 : vector<1x128xf32> to vector<16x128xf32>
    %215 = arith.mulf %196, %214 : vector<16x128xf32>
    %216 = arith.addf %210, %215 : vector<16x128xf32>
    %c120_i32_35 = arith.constant 120 : i32
    %217 = tpu.dynamic_rotate %196 by %c120_i32_35 dim 1 : vector<16x128xf32>, i32 -> vector<16x128xf32>
    %218 = vector.extract_strided_slice %2 {offsets = [23, 0], sizes = [1, 128], strides = [1, 1]} : vector<25x128xf32> to vector<1x128xf32>
    %219 = vector.shape_cast %218 : vector<1x128xf32> to vector<128xf32>
    %220 = vector.shape_cast %219 : vector<128xf32> to vector<1x128xf32>
    %221 = vector.broadcast %220 : vector<1x128xf32> to vector<16x128xf32>
    %222 = arith.mulf %217, %221 : vector<16x128xf32>
    %223 = arith.addf %216, %222 : vector<16x128xf32>
    %c112_i32_36 = arith.constant 112 : i32
    %224 = tpu.dynamic_rotate %196 by %c112_i32_36 dim 1 : vector<16x128xf32>, i32 -> vector<16x128xf32>
    %225 = vector.extract_strided_slice %2 {offsets = [24, 0], sizes = [1, 128], strides = [1, 1]} : vector<25x128xf32> to vector<1x128xf32>
    %226 = vector.shape_cast %225 : vector<1x128xf32> to vector<128xf32>
    %227 = vector.shape_cast %226 : vector<128xf32> to vector<1x128xf32>
    %228 = vector.broadcast %227 : vector<1x128xf32> to vector<16x128xf32>
    %229 = arith.mulf %224, %228 : vector<16x128xf32>
    %230 = arith.addf %223, %229 : vector<16x128xf32>
    %c0_37 = arith.constant 0 : index
    %c0_38 = arith.constant 0 : index
    %231 = vector.load %arg3[%c0_37, %c0_38] : memref<1x128xf32, #tpu.memory_space<vmem>>, vector<1x128xf32>
    %232 = vector.broadcast %231 : vector<1x128xf32> to vector<16x128xf32>
    %233 = arith.mulf %230, %232 : vector<16x128xf32>
    %c0_39 = arith.constant 0 : index
    %c0_40 = arith.constant 0 : index
    %234 = vector.load %arg4[%c0_39, %c0_40] : memref<1x128xf32, #tpu.memory_space<vmem>>, vector<1x128xf32>
    %235 = vector.broadcast %234 : vector<1x128xf32> to vector<16x128xf32>
    %236 = arith.addf %233, %235 : vector<16x128xf32>
    %cst_41 = arith.constant 2.500000e+01 : f32
    %237 = vector.broadcast %cst_41 : f32 to vector<16x128xf32>
    %238 = arith.minimumf %236, %237 : vector<16x128xf32>
    %239 = math.exp %238 : vector<16x128xf32>
    %cst_42 = arith.constant 1.000000e+00 : f32
    %240 = vector.broadcast %cst_42 : f32 to vector<16x128xf32>
    %241 = arith.addf %240, %239 : vector<16x128xf32>
    %242 = arith.mulf %241, %241 : vector<16x128xf32>
    %cst_43 = arith.constant 1.000000e+00 : f32
    %243 = vector.broadcast %cst_43 : f32 to vector<16x128xf32>
    %244 = arith.addf %242, %243 : vector<16x128xf32>
    %245 = tpu.reciprocal %244 : vector<16x128xf32> -> vector<16x128xf32>
    %cst_44 = arith.constant 2.000000e+00 : f32
    %246 = vector.broadcast %cst_44 : f32 to vector<16x128xf32>
    %247 = arith.mulf %246, %245 : vector<16x128xf32>
    %cst_45 = arith.constant 1.000000e+00 : f32
    %248 = vector.broadcast %cst_45 : f32 to vector<16x128xf32>
    %249 = arith.subf %248, %247 : vector<16x128xf32>
    %250 = arith.mulf %236, %249 : vector<16x128xf32>
    %c0_46 = arith.constant 0 : index
    %c0_47 = arith.constant 0 : index
    %c0_48 = arith.constant 0 : index
    %251 = vector.load %arg5[%c0_46, %c0_47, %c0_48] : memref<1x16x128xf32, #tpu.memory_space<vmem>>, vector<1x16x128xf32>
    %252 = vector.shape_cast %251 : vector<1x16x128xf32> to vector<16x128xf32>
    %253 = vector.shape_cast %250 : vector<16x128xf32> to vector<1x16x128xf32>
    tpu.vector_store %arg5[%c0_46, %c0_47, %c0_48], %253 {strides = array<i32>} : memref<1x16x128xf32, #tpu.memory_space<vmem>>, vector<1x16x128xf32>,
    return
  }
  func.func @transform_0(%arg0: i32) -> (i32, i32, i32) {
    %c0_i32 = arith.constant 0 : i32
    %c0_i32_0 = arith.constant 0 : i32
    %c0_i32_1 = arith.constant 0 : i32
    return %arg0, %c0_i32, %c0_i32_0 : i32, i32, i32
  }
  func.func @transform_1(%arg0: i32) -> (i32, i32) {
    %c0_i32 = arith.constant 0 : i32
    %c0_i32_0 = arith.constant 0 : i32
    %c0_i32_1 = arith.constant 0 : i32
    return %c0_i32, %c0_i32_0 : i32, i32
  }
  func.func @transform_2(%arg0: i32) -> (i32, i32) {
    %c0_i32 = arith.constant 0 : i32
    %c0_i32_0 = arith.constant 0 : i32
    %c0_i32_1 = arith.constant 0 : i32
    return %c0_i32, %c0_i32_0 : i32, i32
  }
  func.func @transform_3(%arg0: i32) -> (i32, i32) {
    %c0_i32 = arith.constant 0 : i32
    %c0_i32_0 = arith.constant 0 : i32
    %c0_i32_1 = arith.constant 0 : i32
    return %c0_i32, %c0_i32_0 : i32, i32
  }
  func.func @transform_4(%arg0: i32) -> (i32, i32, i32) {
    %c0_i32 = arith.constant 0 : i32
    %c0_i32_0 = arith.constant 0 : i32
    %c0_i32_1 = arith.constant 0 : i32
    return %arg0, %c0_i32, %c0_i32_0 : i32, i32, i32
  }
}

</mosaic_0001>

<llo_original>
// kernel: gsconv_forward.3
$region0: #{gsconv_forward.3}
  #allocation0 [shape = 'u32[]', space=smem, size = 0x4, offset = 0x4, fixed_abs, tag = 'smem constant byte address 0x4 - core index']
  #allocation1 [shape = 'u32[144,128]{1,0:T(1,128)}', space=vmem, size = 0x12000, scoped, tag = 'internal scratch']
  %s0 = inlined_call_operand.vmem [shape: f32[2,16,128], index: 0, kind: input, shape index: {}]
  %s1 = inlined_call_operand.vmem [shape: f32[25,128], index: 1, kind: input, shape index: {}]
  %s2 = inlined_call_operand.vmem [shape: f32[1,128], index: 2, kind: input, shape index: {}]
  %s3 = inlined_call_operand.vmem [shape: f32[1,128], index: 3, kind: input, shape index: {}]
  %s4 = inlined_call_operand.vmem [shape: f32[2,16,128], index: 4, kind: output, shape index: {}]
  %s5 = sld [smem:[#allocation0]]
  $region49: #{gsconv_forward.3} parent=0
    _
  %s7 = ssub.s32 1, %s5
  %s8 = scalar_select 0, %s7, %s5
  loop: start=0, step=1, limit=4
  $region2: #{gsconv_forward.3} parent=0 // loop_pre_header
    _
  $region3: #{gsconv_forward.3} parent=0 // loop_header
    %s10 = sphi 0, %s14
    %p11 = scmp.ge.s32.totalorder %s10, 4
    %s20 = sphi 0, %s22
    %s23 = sphi 0, %s20
    %s24 = sphi 0, %s23
    %s40 = sphi 0, %s24
    %s44 = sphi 0, %s44
    %s46 = sphi 0, %s44
    %s47 = sphi 0, %s46
    %s61 = sphi 0, %s47
    %s65 = sphi 0, %s65
    %s67 = sphi 0, %s65
    %s68 = sphi 0, %s67
    %s82 = sphi 0, %s68
    %s86 = sphi 0, %s86
    %s88 = sphi 0, %s86
    %s89 = sphi 0, %s88
    %s103 = sphi 0, %s89
    %s109 = sphi 0, %s111
    %s112 = sphi 0, %s109
    %s113 = sphi 0, %s112
    %s129 = sphi 0, %s113
  $region4: #{gsconv_forward.3} parent=0 // loop_header_branch
    %13 = sbr.rel (%p11) target = $region8
  $region5: #{gsconv_forward.3} parent=0 // loop_body
    %s15 = ssub.s32 %s10, 1
    %s16 = ssub.s32 %s10, 2
    %s17 = sadd.s32 %s10, 1
    %s18 = ssub.s32 %s10, %s17
    %p19 = scmp.eq.s32.totalorder %s18, 0
    %s21 = sadd.s32 %s20, 1
    %s22 = scalar_select %p19, %s20, %s21
    %p25 = pneg %p19
    %p26 = scmp.eq.s32.totalorder %s10, 1
    %p27 = por %p25, %p26
    %p28 = scmp.ne.s32.totalorder %s20, %s23
    %p29 = scmp.eq.s32.totalorder %s10, 0
    %p30 = por %p28, %p29
    %p31 = scmp.ne.s32.totalorder %s20, %s23
    %p32 = scmp.eq.s32.totalorder %s15, 1
    %p33 = por %p31, %p32
    %p34 = scmp.ne.s32.totalorder %s23, %s24
    %p35 = scmp.eq.s32.totalorder %s15, 0
    %p36 = por %p34, %p35
    %p37 = scmp.ne.s32.totalorder %s23, %s24
    %p38 = scmp.eq.s32.totalorder %s16, 1
    %p39 = por %p37, %p38
    %p41 = scmp.ne.s32.totalorder %s24, %s40
    %p42 = scmp.eq.s32.totalorder %s16, 0
    %p43 = por %p41, %p42
    %s45 = sadd.s32 %s44, 1
    %p48 = scmp.eq.s32.totalorder %s10, 1
    %p49 = scmp.ne.s32.totalorder %s44, %s46
    %p50 = scmp.eq.s32.totalorder %s10, 0
    %p51 = por %p49, %p50
    %p52 = scmp.ne.s32.totalorder %s44, %s46
    %p53 = scmp.eq.s32.totalorder %s15, 1
    %p54 = por %p52, %p53
    %p55 = scmp.ne.s32.totalorder %s46, %s47
    %p56 = scmp.eq.s32.totalorder %s15, 0
    %p57 = por %p55, %p56
    %p58 = scmp.ne.s32.totalorder %s46, %s47
    %p59 = scmp.eq.s32.totalorder %s16, 1
    %p60 = por %p58, %p59
    %p62 = scmp.ne.s32.totalorder %s47, %s61
    %p63 = scmp.eq.s32.totalorder %s16, 0
    %p64 = por %p62, %p63
    %s66 = sadd.s32 %s65, 1
    %p69 = scmp.eq.s32.totalorder %s10, 1
    %p70 = scmp.ne.s32.totalorder %s65, %s67
    %p71 = scmp.eq.s32.totalorder %s10, 0
    %p72 = por %p70, %p71
    %p73 = scmp.ne.s32.totalorder %s65, %s67
    %p74 = scmp.eq.s32.totalorder %s15, 1
    %p75 = por %p73, %p74
    %p76 = scmp.ne.s32.totalorder %s67, %s68
    %p77 = scmp.eq.s32.totalorder %s15, 0
    %p78 = por %p76, %p77
    %p79 = scmp.ne.s32.totalorder %s67, %s68
    %p80 = scmp.eq.s32.totalorder %s16, 1
    %p81 = por %p79, %p80
    %p83 = scmp.ne.s32.totalorder %s68, %s82
    %p84 = scmp.eq.s32.totalorder %s16, 0
    %p85 = por %p83, %p84
    %s87 = sadd.s32 %s86, 1
    %p90 = scmp.eq.s32.totalorder %s10, 1
    %p91 = scmp.ne.s32.totalorder %s86, %s88
    %p92 = scmp.eq.s32.totalorder %s10, 0
    %p93 = por %p91, %p92
    %p94 = scmp.ne.s32.totalorder %s86, %s88
    %p95 = scmp.eq.s32.totalorder %s15, 1
    %p96 = por %p94, %p95
    %p97 = scmp.ne.s32.totalorder %s88, %s89
    %p98 = scmp.eq.s32.totalorder %s15, 0
    %p99 = por %p97, %p98
    %p100 = scmp.ne.s32.totalorder %s88, %s89
    %p101 = scmp.eq.s32.totalorder %s16, 1
    %p102 = por %p100, %p101
    %p104 = scmp.ne.s32.totalorder %s89, %s103
    %p105 = scmp.eq.s32.totalorder %s16, 0
    %p106 = por %p104, %p105
    %s107 = ssub.s32 %s10, %s17
    %p108 = scmp.eq.s32.totalorder %s107, 0
    %s110 = sadd.s32 %s109, 1
    %s111 = scalar_select %p108, %s109, %s110
    %p114 = pneg %p108
    %p115 = scmp.eq.s32.totalorder %s10, 1
    %p116 = por %p114, %p115
    %p117 = scmp.ne.s32.totalorder %s109, %s112
    %p118 = scmp.eq.s32.totalorder %s10, 0
    %p119 = por %p117, %p118
    %p120 = scmp.ne.s32.totalorder %s109, %s112
    %p121 = scmp.eq.s32.totalorder %s15, 1
    %p122 = por %p120, %p121
    %p123 = scmp.ne.s32.totalorder %s112, %s113
    %p124 = scmp.eq.s32.totalorder %s15, 0
    %p125 = por %p123, %p124
    %p126 = scmp.ne.s32.totalorder %s112, %s113
    %p127 = scmp.eq.s32.totalorder %s16, 1
    %p128 = por %p126, %p127
    %p130 = scmp.ne.s32.totalorder %s113, %s129
    %p131 = scmp.eq.s32.totalorder %s16, 0
    %p132 = por %p130, %p131
    %p133 = scmp.le.s32.totalorder 1, %s10
    %p134 = scmp.lt.s32.totalorder %s10, 3
    %p135 = pnand %p133, %p134
    %p136 = pneg %p135
    // Predicated region
    $region9: #{gsconv_forward.3} parent=5 // pred_check
      _
    $region10: #{gsconv_forward.3} parent=5 // pred_check_branch
      %138 = sbr.rel (%p135) target = $region12
    $region11: #{gsconv_forward.3} parent=5 // pred_region
      %s139 = ssub.s32 %s10, 1
      // Predicated region
      $region13: #{gsconv_forward.3} parent=11 // pred_check
        %p140 = pneg %p57
      $region14: #{gsconv_forward.3} parent=11 // pred_check_branch
        %142 = sbr.rel (%p140) target = $region16
      $region15: #{gsconv_forward.3} parent=11 // pred_region
        _
      $region16: #{gsconv_forward.3} parent=11 // pred_fallthru
        _
      // Predicated region
      $region17: #{gsconv_forward.3} parent=11 // pred_check
        %p143 = pneg %p78
      $region18: #{gsconv_forward.3} parent=11 // pred_check_branch
        %145 = sbr.rel (%p143) target = $region20
      $region19: #{gsconv_forward.3} parent=11 // pred_region
        _
      $region20: #{gsconv_forward.3} parent=11 // pred_fallthru
        _
      // Predicated region
      $region21: #{gsconv_forward.3} parent=11 // pred_check
        %p146 = pneg %p99
      $region22: #{gsconv_forward.3} parent=11 // pred_check_branch
        %148 = sbr.rel (%p146) target = $region24
      $region23: #{gsconv_forward.3} parent=11 // pred_region
        _
      $region24: #{gsconv_forward.3} parent=11 // pred_fallthru
        _
    $region12: #{gsconv_forward.3} parent=5 // pred_fallthru
      _
    %p149 = scmp.lt.s32.totalorder %s10, 2
    // Predicated region
    $region25: #{gsconv_forward.3} parent=5 // pred_check
      %p150 = pneg %p149
    $region26: #{gsconv_forward.3} parent=5 // pred_check_branch
      %152 = sbr.rel (%p150) target = $region28
    $region27: #{gsconv_forward.3} parent=5 // pred_region
      // Predicated region
      $region29: #{gsconv_forward.3} parent=27 // pred_check
        %p153 = pneg %p30
      $region30: #{gsconv_forward.3} parent=27 // pred_check_branch
        %155 = sbr.rel (%p153) target = $region32
      $region31: #{gsconv_forward.3} parent=27 // pred_region
        %p156 = scmp.lt.s32.totalorder %s10, 1
        %s157 = scalar_select %p156, %s10, 1
        %s158 = smul.addr %s157, 2
        %s159 = smul.addr %s158, 8
        %s160 = scalar_lea.vmem %s0, %s159
      $region32: #{gsconv_forward.3} parent=27 // pred_fallthru
        _
    $region28: #{gsconv_forward.3} parent=5 // pred_fallthru
      _
    %p161 = scmp.le.s32.totalorder 1, %s10
    %p162 = scmp.lt.s32.totalorder %s10, 3
    %p163 = pnand %p161, %p162
    %p164 = pneg %p163
    // Predicated region
    $region33: #{gsconv_forward.3} parent=5 // pred_check
      _
    $region34: #{gsconv_forward.3} parent=5 // pred_check_branch
      %166 = sbr.rel (%p163) target = $region36
    $region35: #{gsconv_forward.3} parent=5 // pred_region
      %s167 = ssub.s32 %s10, 1
      %p168 = scmp.lt.s32.totalorder %s15, 1
      %s169 = scalar_select %p168, %s15, 1
      %s170 = smul.addr %s169, 2
      %s171 = smul.addr %s170, 8
      %s172 = scalar_lea.vmem %s0, %s171
      %p173 = pneg %p36
      %p174 = pneg %p33
      %p175 = pneg %p57
      %p176 = pneg %p54
      %p177 = pneg %p78
      %p178 = pneg %p75
      %p179 = pneg %p99
      %p180 = pneg %p96
      %p181 = pneg %p125
      %p182 = pneg %p122
      %p183 = scmp.lt.s32.totalorder %s15, 1
      %s184 = scalar_select %p183, %s15, 1
      %s185 = smul.addr %s184, 2
      %s186 = smul.addr %s185, 8
      %s187 = scalar_lea.vmem %s4, %s186
      %p188 = scmp.lt.s32.totalorder %s15, 1
      %s189 = scalar_select %p188, %s15, 1
      %s190 = smul.addr %s189, 2
      %s191 = smul.addr %s190, 8
      %s192 = scalar_lea.vmem %s0, %s191
      %p193 = scmp.lt.s32.totalorder %s15, 1
      %s194 = scalar_select %p193, %s15, 1
      %s195 = smul.addr %s194, 2
      %s196 = smul.addr %s195, 8
      %s197 = scalar_lea.vmem %s4, %s196
      %v198 = vld [vmem:[%s192] sm:$0xff]
      %v199 = vld [vmem:[%s192 + $0x8] sm:$0xff]
      %v200 = vld [vmem:[%s1] sm:$0xff]
      %v201 = vld [vmem:[%s1 + $0x8] sm:$0xff]
      %v202 = vld [vmem:[%s1 + $0x10] sm:$0xff]
      %v203 = vld [vmem:[%s1 + $0x18] sm:$0x1]
      %v204 = vlaneseq
      %v205 = vshrl.u32 %v204, 7
      %v206 = vadd.s32 %v205, 8
      %v207 = vrot.slane %v198, 6
      %v208 = vrot.slane %v199, 6
      %vm209 = vcmp.lt.s32.totalorder %v205, 2
      %v210 = vsel %vm209, %v207, %v208
      %v211 = vsel %vm209, %v208, %v207
      %v212 = vadd.s32 %v205, 4294967294
      %v213 = vadd.s32 %v206, 4294967294
      %vm214 = vcmp.ge.s32.totalorder %v212, 0
      %vm215 = vcmp.ge.s32.totalorder %v213, 0
      %vm216 = vcmp.lt.s32.totalorder %v212, 16
      %vm217 = vcmp.lt.s32.totalorder %v213, 16
      %vm218 = vmand %vm214, %vm216
      %vm219 = vmand %vm215, %vm217
      %v220 = vsel %vm218, 1, 0
      %v221 = vsel %vm219, 1, 0
      %vm222 = vcmp.eq.s32.totalorder %v220, 1
      %vm223 = vcmp.eq.s32.totalorder %v221, 1
      %v224 = vsel %vm222, %v211, 0.0
      %v225 = vsel %vm223, %v210, 0.0
      %226 = vrot.lane.b32.xlu0 %v224, 16
      %v227 = vpop.permute.xlu0 %226
      %228 = vrot.lane.b32.xlu0 %v225, 16
      %v229 = vpop.permute.xlu0 %228
      %v230 = vlaneseq
      %v231 = vshrl.u32 %v230, 7
      %v232 = vsub.s32 0, %v231
      %v233 = vrot.slane %v200, %v232
      %v234 = vmul.f32 %v227, %v233
      %v235 = vmul.f32 %v229, %v233
      %v236 = vadd.f32 %v234, 0.0
      %v237 = vadd.f32 %v235, 0.0
      %238 = vrot.lane.b32.xlu0 %v224, 8
      %v239 = vpop.permute.xlu0 %238
      %240 = vrot.lane.b32.xlu0 %v225, 8
      %v241 = vpop.permute.xlu0 %240
      %v242 = vlaneseq
      %v243 = vshrl.u32 %v242, 7
      %v244 = vsub.s32 1, %v243
      %v245 = vrot.slane %v200, %v244
      %v246 = vmul.f32 %v239, %v245
      %v247 = vmul.f32 %v241, %v245
      %v248 = vadd.f32 %v236, %v246
      %v249 = vadd.f32 %v237, %v247
      %v250 = vlaneseq
      %v251 = vshrl.u32 %v250, 7
      %v252 = vsub.s32 2, %v251
      %v253 = vrot.slane %v200, %v252
      %v254 = vmul.f32 %v224, %v253
      %v255 = vmul.f32 %v225, %v253
      %v256 = vadd.f32 %v248, %v254
      %v257 = vadd.f32 %v249, %v255
      %258 = vrot.lane.b32.xlu0 %v224, 120
      %v259 = vpop.permute.xlu0 %258
      %260 = vrot.lane.b32.xlu0 %v225, 120
      %v261 = vpop.permute.xlu0 %260
      %v262 = vlaneseq
      %v263 = vshrl.u32 %v262, 7
      %v264 = vsub.s32 3, %v263
      %v265 = vrot.slane %v200, %v264
      %v266 = vmul.f32 %v259, %v265
      %v267 = vmul.f32 %v261, %v265
      %v268 = vadd.f32 %v256, %v266
      %v269 = vadd.f32 %v257, %v267
      %270 = vrot.lane.b32.xlu0 %v224, 112
      %v271 = vpop.permute.xlu0 %270
      %272 = vrot.lane.b32.xlu0 %v225, 112
      %v273 = vpop.permute.xlu0 %272
      %v274 = vlaneseq
      %v275 = vshrl.u32 %v274, 7
      %v276 = vsub.s32 4, %v275
      %v277 = vrot.slane %v200, %v276
      %v278 = vmul.f32 %v271, %v277
      %v279 = vmul.f32 %v273, %v277
      %v280 = vadd.f32 %v268, %v278
      %v281 = vadd.f32 %v269, %v279
      %v282 = vrot.slane %v198, 7
      %v283 = vrot.slane %v199, 7
      %vm284 = vcmp.lt.s32.totalorder %v205, 1
      %v285 = vsel %vm284, %v282, %v283
      %v286 = vsel %vm284, %v283, %v282
      %v287 = vadd.s32 %v205, 4294967295
      %v288 = vadd.s32 %v206, 4294967295
      %vm289 = vcmp.ge.s32.totalorder %v287, 0
      %vm290 = vcmp.ge.s32.totalorder %v288, 0
      %vm291 = vcmp.lt.s32.totalorder %v287, 16
      %vm292 = vcmp.lt.s32.totalorder %v288, 16
      %vm293 = vmand %vm289, %vm291
      %vm294 = vmand %vm290, %vm292
      %v295 = vsel %vm293, 1, 0
      %v296 = vsel %vm294, 1, 0
      %vm297 = vcmp.eq.s32.totalorder %v295, 1
      %vm298 = vcmp.eq.s32.totalorder %v296, 1
      %v299 = vsel %vm297, %v286, 0.0
      %v300 = vsel %vm298, %v285, 0.0
      %301 = vrot.lane.b32.xlu0 %v299, 16
      %v302 = vpop.permute.xlu0 %301
      %303 = vrot.lane.b32.xlu0 %v300, 16
      %v304 = vpop.permute.xlu0 %303
      %v305 = vlaneseq
      %v306 = vshrl.u32 %v305, 7
      %v307 = vsub.s32 5, %v306
      %v308 = vrot.slane %v200, %v307
      %v309 = vmul.f32 %v302, %v308
      %v310 = vmul.f32 %v304, %v308
      %v311 = vadd.f32 %v280, %v309
      %v312 = vadd.f32 %v281, %v310
      %313 = vrot.lane.b32.xlu0 %v299, 8
      %v314 = vpop.permute.xlu0 %313
      %315 = vrot.lane.b32.xlu0 %v300, 8
      %v316 = vpop.permute.xlu0 %315
      %v317 = vlaneseq
      %v318 = vshrl.u32 %v317, 7
      %v319 = vsub.s32 6, %v318
      %v320 = vrot.slane %v200, %v319
      %v321 = vmul.f32 %v314, %v320
      %v322 = vmul.f32 %v316, %v320
      %v323 = vadd.f32 %v311, %v321
      %v324 = vadd.f32 %v312, %v322
      %v325 = vlaneseq
      %v326 = vshrl.u32 %v325, 7
      %v327 = vsub.s32 7, %v326
      %v328 = vrot.slane %v200, %v327
      %v329 = vmul.f32 %v299, %v328
      %v330 = vmul.f32 %v300, %v328
      %v331 = vadd.f32 %v323, %v329
      %v332 = vadd.f32 %v324, %v330
      %333 = vrot.lane.b32.xlu0 %v299, 120
      %v334 = vpop.permute.xlu0 %333
      %335 = vrot.lane.b32.xlu0 %v300, 120
      %v336 = vpop.permute.xlu0 %335
      %v337 = vlaneseq
      %v338 = vshrl.u32 %v337, 7
      %v339 = vsub.s32 0, %v338
      %v340 = vrot.slane %v201, %v339
      %v341 = vmul.f32 %v334, %v340
      %v342 = vmul.f32 %v336, %v340
      %v343 = vadd.f32 %v331, %v341
      %v344 = vadd.f32 %v332, %v342
      %345 = vrot.lane.b32.xlu0 %v299, 112
      %v346 = vpop.permute.xlu0 %345
      %347 = vrot.lane.b32.xlu0 %v300, 112
      %v348 = vpop.permute.xlu0 %347
      %v349 = vlaneseq
      %v350 = vshrl.u32 %v349, 7
      %v351 = vsub.s32 1, %v350
      %v352 = vrot.slane %v201, %v351
      %v353 = vmul.f32 %v346, %v352
      %v354 = vmul.f32 %v348, %v352
      %v355 = vadd.f32 %v343, %v353
      %v356 = vadd.f32 %v344, %v354
      %357 = vrot.lane.b32.xlu0 %v198, 16
      %v358 = vpop.permute.xlu0 %357
      %359 = vrot.lane.b32.xlu0 %v199, 16
      %v360 = vpop.permute.xlu0 %359
      %v361 = vlaneseq
      %v362 = vshrl.u32 %v361, 7
      %v363 = vsub.s32 2, %v362
      %v364 = vrot.slane %v201, %v363
      %v365 = vmul.f32 %v358, %v364
      %v366 = vmul.f32 %v360, %v364
      %v367 = vadd.f32 %v355, %v365
      %v368 = vadd.f32 %v356, %v366
      %369 = vrot.lane.b32.xlu0 %v198, 8
      %v370 = vpop.permute.xlu0 %369
      %371 = vrot.lane.b32.xlu0 %v199, 8
      %v372 = vpop.permute.xlu0 %371
      %v373 = vlaneseq
      %v374 = vshrl.u32 %v373, 7
      %v375 = vsub.s32 3, %v374
      %v376 = vrot.slane %v201, %v375
      %v377 = vmul.f32 %v370, %v376
      %v378 = vmul.f32 %v372, %v376
      %v379 = vadd.f32 %v367, %v377
      %v380 = vadd.f32 %v368, %v378
      %v381 = vlaneseq
      %v382 = vshrl.u32 %v381, 7
      %v383 = vsub.s32 4, %v382
      %v384 = vrot.slane %v201, %v383
      %v385 = vmul.f32 %v198, %v384
      %v386 = vmul.f32 %v199, %v384
      %v387 = vadd.f32 %v379, %v385
      %v388 = vadd.f32 %v380, %v386
      %389 = vrot.lane.b32.xlu0 %v198, 120
      %v390 = vpop.permute.xlu0 %389
      %391 = vrot.lane.b32.xlu0 %v199, 120
      %v392 = vpop.permute.xlu0 %391
      %v393 = vlaneseq
      %v394 = vshrl.u32 %v393, 7
      %v395 = vsub.s32 5, %v394
      %v396 = vrot.slane %v201, %v395
      %v397 = vmul.f32 %v390, %v396
      %v398 = vmul.f32 %v392, %v396
      %v399 = vadd.f32 %v387, %v397
      %v400 = vadd.f32 %v388, %v398
      %401 = vrot.lane.b32.xlu0 %v198, 112
      %v402 = vpop.permute.xlu0 %401
      %403 = vrot.lane.b32.xlu0 %v199, 112
      %v404 = vpop.permute.xlu0 %403
      %v405 = vlaneseq
      %v406 = vshrl.u32 %v405, 7
      %v407 = vsub.s32 6, %v406
      %v408 = vrot.slane %v201, %v407
      %v409 = vmul.f32 %v402, %v408
      %v410 = vmul.f32 %v404, %v408
      %v411 = vadd.f32 %v399, %v409
      %v412 = vadd.f32 %v400, %v410
      %v413 = vrot.slane %v198, 1
      %v414 = vrot.slane %v199, 1
      %vm415 = vcmp.lt.s32.totalorder %v205, 7
      %v416 = vsel %vm415, %v413, %v414
      %v417 = vsel %vm415, %v414, %v413
      %v418 = vadd.s32 %v205, 1
      %v419 = vadd.s32 %v206, 1
      %vm420 = vcmp.ge.s32.totalorder %v418, 0
      %vm421 = vcmp.ge.s32.totalorder %v419, 0
      %vm422 = vcmp.lt.s32.totalorder %v418, 16
      %vm423 = vcmp.lt.s32.totalorder %v419, 16
      %vm424 = vmand %vm420, %vm422
      %vm425 = vmand %vm421, %vm423
      %v426 = vsel %vm424, 1, 0
      %v427 = vsel %vm425, 1, 0
      %vm428 = vcmp.eq.s32.totalorder %v426, 1
      %vm429 = vcmp.eq.s32.totalorder %v427, 1
      %v430 = vsel %vm428, %v416, 0.0
      %v431 = vsel %vm429, %v417, 0.0
      %432 = vrot.lane.b32.xlu0 %v430, 16
      %v433 = vpop.permute.xlu0 %432
      %434 = vrot.lane.b32.xlu0 %v431, 16
      %v435 = vpop.permute.xlu0 %434
      %v436 = vlaneseq
      %v437 = vshrl.u32 %v436, 7
      %v438 = vsub.s32 7, %v437
      %v439 = vrot.slane %v201, %v438
      %v440 = vmul.f32 %v433, %v439
      %v441 = vmul.f32 %v435, %v439
      %v442 = vadd.f32 %v411, %v440
      %v443 = vadd.f32 %v412, %v441
      %444 = vrot.lane.b32.xlu0 %v430, 8
      %v445 = vpop.permute.xlu0 %444
      %446 = vrot.lane.b32.xlu0 %v431, 8
      %v447 = vpop.permute.xlu0 %446
      %v448 = vlaneseq
      %v449 = vshrl.u32 %v448, 7
      %v450 = vsub.s32 0, %v449
      %v451 = vrot.slane %v202, %v450
      %v452 = vmul.f32 %v445, %v451
      %v453 = vmul.f32 %v447, %v451
      %v454 = vadd.f32 %v442, %v452
      %v455 = vadd.f32 %v443, %v453
      %v456 = vlaneseq
      %v457 = vshrl.u32 %v456, 7
      %v458 = vsub.s32 1, %v457
      %v459 = vrot.slane %v202, %v458
      %v460 = vmul.f32 %v430, %v459
      %v461 = vmul.f32 %v431, %v459
      %v462 = vadd.f32 %v454, %v460
      %v463 = vadd.f32 %v455, %v461
      %464 = vrot.lane.b32.xlu0 %v430, 120
      %v465 = vpop.permute.xlu0 %464
      %466 = vrot.lane.b32.xlu0 %v431, 120
      %v467 = vpop.permute.xlu0 %466
      %v468 = vlaneseq
      %v469 = vshrl.u32 %v468, 7
      %v470 = vsub.s32 2, %v469
      %v471 = vrot.slane %v202, %v470
      %v472 = vmul.f32 %v465, %v471
      %v473 = vmul.f32 %v467, %v471
      %v474 = vadd.f32 %v462, %v472
      %v475 = vadd.f32 %v463, %v473
      %476 = vrot.lane.b32.xlu0 %v430, 112
      %v477 = vpop.permute.xlu0 %476
      %478 = vrot.lane.b32.xlu0 %v431, 112
      %v479 = vpop.permute.xlu0 %478
      %v480 = vlaneseq
      %v481 = vshrl.u32 %v480, 7
      %v482 = vsub.s32 3, %v481
      %v483 = vrot.slane %v202, %v482
      %v484 = vmul.f32 %v477, %v483
      %v485 = vmul.f32 %v479, %v483
      %v486 = vadd.f32 %v474, %v484
      %v487 = vadd.f32 %v475, %v485
      %v488 = vrot.slane %v198, 2
      %v489 = vrot.slane %v199, 2
      %vm490 = vcmp.lt.s32.totalorder %v205, 6
      %v491 = vsel %vm490, %v488, %v489
      %v492 = vsel %vm490, %v489, %v488
      %v493 = vadd.s32 %v205, 2
      %v494 = vadd.s32 %v206, 2
      %vm495 = vcmp.ge.s32.totalorder %v493, 0
      %vm496 = vcmp.ge.s32.totalorder %v494, 0
      %vm497 = vcmp.lt.s32.totalorder %v493, 16
      %vm498 = vcmp.lt.s32.totalorder %v494, 16
      %vm499 = vmand %vm495, %vm497
      %vm500 = vmand %vm496, %vm498
      %v501 = vsel %vm499, 1, 0
      %v502 = vsel %vm500, 1, 0
      %vm503 = vcmp.eq.s32.totalorder %v501, 1
      %vm504 = vcmp.eq.s32.totalorder %v502, 1
      %v505 = vsel %vm503, %v491, 0.0
      %v506 = vsel %vm504, %v492, 0.0
      %507 = vrot.lane.b32.xlu0 %v505, 16
      %v508 = vpop.permute.xlu0 %507
      %509 = vrot.lane.b32.xlu0 %v506, 16
      %v510 = vpop.permute.xlu0 %509
      %v511 = vlaneseq
      %v512 = vshrl.u32 %v511, 7
      %v513 = vsub.s32 4, %v512
      %v514 = vrot.slane %v202, %v513
      %v515 = vmul.f32 %v508, %v514
      %v516 = vmul.f32 %v510, %v514
      %v517 = vadd.f32 %v486, %v515
      %v518 = vadd.f32 %v487, %v516
      %519 = vrot.lane.b32.xlu0 %v505, 8
      %v520 = vpop.permute.xlu0 %519
      %521 = vrot.lane.b32.xlu0 %v506, 8
      %v522 = vpop.permute.xlu0 %521
      %v523 = vlaneseq
      %v524 = vshrl.u32 %v523, 7
      %v525 = vsub.s32 5, %v524
      %v526 = vrot.slane %v202, %v525
      %v527 = vmul.f32 %v520, %v526
      %v528 = vmul.f32 %v522, %v526
      %v529 = vadd.f32 %v517, %v527
      %v530 = vadd.f32 %v518, %v528
      %v531 = vlaneseq
      %v532 = vshrl.u32 %v531, 7
      %v533 = vsub.s32 6, %v532
      %v534 = vrot.slane %v202, %v533
      %v535 = vmul.f32 %v505, %v534
      %v536 = vmul.f32 %v506, %v534
      %v537 = vadd.f32 %v529, %v535
      %v538 = vadd.f32 %v530, %v536
      %539 = vrot.lane.b32.xlu0 %v505, 120
      %v540 = vpop.permute.xlu0 %539
      %541 = vrot.lane.b32.xlu0 %v506, 120
      %v542 = vpop.permute.xlu0 %541
      %v543 = vlaneseq
      %v544 = vshrl.u32 %v543, 7
      %v545 = vsub.s32 7, %v544
      %v546 = vrot.slane %v202, %v545
      %v547 = vmul.f32 %v540, %v546
      %v548 = vmul.f32 %v542, %v546
      %v549 = vadd.f32 %v537, %v547
      %v550 = vadd.f32 %v538, %v548
      %551 = vrot.lane.b32.xlu0 %v505, 112
      %v552 = vpop.permute.xlu0 %551
      %553 = vrot.lane.b32.xlu0 %v506, 112
      %v554 = vpop.permute.xlu0 %553
      %v555 = vlaneseq
      %v556 = vshrl.u32 %v555, 7
      %v557 = vsub.s32 0, %v556
      %v558 = vrot.slane %v203, %v557
      %v559 = vmul.f32 %v552, %v558
      %v560 = vmul.f32 %v554, %v558
      %v561 = vadd.f32 %v549, %v559
      %v562 = vadd.f32 %v550, %v560
      %v563 = vld [vmem:[%s2] sm:$0x1]
      %v565 = vlaneseq
      %v566 = vshrl.u32 %v565, 7
      %v567 = vsub.s32 0, %v566
      %v568 = vrot.slane %v563, %v567
      %v570 = vmul.f32 %v561, %v568
      %v571 = vmul.f32 %v562, %v568
      %v572 = vld [vmem:[%s3] sm:$0x1]
      %v574 = vlaneseq
      %v575 = vshrl.u32 %v574, 7
      %v576 = vsub.s32 0, %v575
      %v577 = vrot.slane %v572, %v576
      %v579 = vadd.f32 %v570, %v577
      %v580 = vadd.f32 %v571, %v577
      %v581 = vmin.f32 %v579, 25.0
      %v582 = vmin.f32 %v580, 25.0
      %v583 = vmul.f32 %v581, 1.442695
      %v584 = vpow.pop %v583
      %v585 = vmul.f32 %v582, 1.442695
      %v586 = vpow.pop %v585
      %v587 = vadd.f32 %v584, 1.0
      %v588 = vadd.f32 %v586, 1.0
      %v589 = vmul.f32 %v587, %v587
      %v590 = vmul.f32 %v588, %v588
      %v591 = vadd.f32 %v589, 1.0
      %v592 = vadd.f32 %v590, 1.0
      %v593 = vrcp.pop %v591
      %v594 = vrcp.pop %v592
      %v595 = vmul.f32 %v593, 2.0
      %v596 = vmul.f32 %v594, 2.0
      %v597 = vsub.f32 1.0, %v595
      %v598 = vsub.f32 1.0, %v596
      %v599 = vmul.f32 %v579, %v597
      %v600 = vmul.f32 %v580, %v598
      %601 = vst [vmem:[%s197] sm:$0xff] %v599
      %602 = vst [vmem:[%s197 + $0x8] sm:$0xff] %v600
      %p603 = scmp.lt.s32.totalorder %s15, 1
      %s604 = scalar_select %p603, %s15, 1
      %s605 = smul.addr %s604, 2
      %s606 = smul.addr %s605, 8
      %s607 = scalar_lea.vmem %s4, %s606
      // Predicated region
      $region37: #{gsconv_forward.3} parent=35 // pred_check
        %p608 = pneg %p122
      $region38: #{gsconv_forward.3} parent=35 // pred_check_branch
        %610 = sbr.rel (%p608) target = $region40
      $region39: #{gsconv_forward.3} parent=35 // pred_region
        _
      $region40: #{gsconv_forward.3} parent=35 // pred_fallthru
        _
    $region36: #{gsconv_forward.3} parent=5 // pred_fallthru
      _
    %p611 = scmp.le.s32.totalorder 2, %s10
    // Predicated region
    $region41: #{gsconv_forward.3} parent=5 // pred_check
      %p612 = pneg %p611
    $region42: #{gsconv_forward.3} parent=5 // pred_check_branch
      %614 = sbr.rel (%p612) target = $region44
    $region43: #{gsconv_forward.3} parent=5 // pred_region
      %s615 = ssub.s32 %s10, 2
      // Predicated region
      $region45: #{gsconv_forward.3} parent=43 // pred_check
        %p616 = pneg %p128
      $region46: #{gsconv_forward.3} parent=43 // pred_check_branch
        %618 = sbr.rel (%p616) target = $region48
      $region47: #{gsconv_forward.3} parent=43 // pred_region
        %p619 = scmp.lt.s32.totalorder %s16, 1
        %s620 = scalar_select %p619, %s16, 1
        %s621 = smul.addr %s620, 2
        %s622 = smul.addr %s621, 8
        %s623 = scalar_lea.vmem %s4, %s622
      $region48: #{gsconv_forward.3} parent=43 // pred_fallthru
        _
    $region44: #{gsconv_forward.3} parent=5 // pred_fallthru
      _
  $region6: #{gsconv_forward.3} parent=0 // loop_footer
    %s14 = sadd.s32 1, %s10
  $region7: #{gsconv_forward.3} parent=0 // loop_footer_branch
    %9 = sbr.rel target = $region3
  $region8: #{gsconv_forward.3} parent=0 // loop_exit
    _

// kernel: gsconv_forward.2
$region0: #{gsconv_forward.2}
  #allocation0 [shape = 'u32[]', space=smem, size = 0x4, offset = 0x4, fixed_abs, tag = 'smem constant byte address 0x4 - core index']
  #allocation1 [shape = 'u32[144,128]{1,0:T(1,128)}', space=vmem, size = 0x12000, scoped, tag = 'internal scratch']
  %s0 = inlined_call_operand.vmem [shape: f32[512,8], index: 0, kind: input, shape index: {}]
  %s1 = inlined_call_operand.vmem [shape: bf16[8,8], index: 1, kind: input, shape index: {}]
  %s2 = inlined_call_operand.vmem [shape: f32[1,8], index: 2, kind: input, shape index: {}]
  %s3 = inlined_call_operand.vmem [shape: f32[1,8], index: 3, kind: input, shape index: {}]
  %s4 = inlined_call_operand.vmem [shape: f32[512,8], index: 4, kind: output, shape index: {}]
  %s5 = sld [smem:[#allocation0]]
  $region49: #{gsconv_forward.2} parent=0
    _
  %s7 = ssub.s32 1, %s5
  %s8 = scalar_select 0, %s7, %s5
  loop: start=0, step=1, limit=4
  $region2: #{gsconv_forward.2} parent=0 // loop_pre_header
    _
  $region3: #{gsconv_forward.2} parent=0 // loop_header
    %s10 = sphi 0, %s14
    %p11 = scmp.ge.s32.totalorder %s10, 4
    %s20 = sphi 0, %s22
    %s23 = sphi 0, %s20
    %s24 = sphi 0, %s23
    %s40 = sphi 0, %s24
    %s44 = sphi 0, %s44
    %s46 = sphi 0, %s44
    %s47 = sphi 0, %s46
    %s61 = sphi 0, %s47
    %s65 = sphi 0, %s65
    %s67 = sphi 0, %s65
    %s68 = sphi 0, %s67
    %s82 = sphi 0, %s68
    %s86 = sphi 0, %s86
    %s88 = sphi 0, %s86
    %s89 = sphi 0, %s88
    %s103 = sphi 0, %s89
    %s109 = sphi 0, %s111
    %s112 = sphi 0, %s109
    %s113 = sphi 0, %s112
    %s129 = sphi 0, %s113
  $region4: #{gsconv_forward.2} parent=0 // loop_header_branch
    %13 = sbr.rel (%p11) target = $region8
  $region5: #{gsconv_forward.2} parent=0 // loop_body
    %s15 = ssub.s32 %s10, 1
    %s16 = ssub.s32 %s10, 2
    %s17 = sadd.s32 %s10, 1
    %s18 = ssub.s32 %s10, %s17
    %p19 = scmp.eq.s32.totalorder %s18, 0
    %s21 = sadd.s32 %s20, 1
    %s22 = scalar_select %p19, %s20, %s21
    %p25 = pneg %p19
    %p26 = scmp.eq.s32.totalorder %s10, 1
    %p27 = por %p25, %p26
    %p28 = scmp.ne.s32.totalorder %s20, %s23
    %p29 = scmp.eq.s32.totalorder %s10, 0
    %p30 = por %p28, %p29
    %p31 = scmp.ne.s32.totalorder %s20, %s23
    %p32 = scmp.eq.s32.totalorder %s15, 1
    %p33 = por %p31, %p32
    %p34 = scmp.ne.s32.totalorder %s23, %s24
    %p35 = scmp.eq.s32.totalorder %s15, 0
    %p36 = por %p34, %p35
    %p37 = scmp.ne.s32.totalorder %s23, %s24
    %p38 = scmp.eq.s32.totalorder %s16, 1
    %p39 = por %p37, %p38
    %p41 = scmp.ne.s32.totalorder %s24, %s40
    %p42 = scmp.eq.s32.totalorder %s16, 0
    %p43 = por %p41, %p42
    %s45 = sadd.s32 %s44, 1
    %p48 = scmp.eq.s32.totalorder %s10, 1
    %p49 = scmp.ne.s32.totalorder %s44, %s46
    %p50 = scmp.eq.s32.totalorder %s10, 0
    %p51 = por %p49, %p50
    %p52 = scmp.ne.s32.totalorder %s44, %s46
    %p53 = scmp.eq.s32.totalorder %s15, 1
    %p54 = por %p52, %p53
    %p55 = scmp.ne.s32.totalorder %s46, %s47
    %p56 = scmp.eq.s32.totalorder %s15, 0
    %p57 = por %p55, %p56
    %p58 = scmp.ne.s32.totalorder %s46, %s47
    %p59 = scmp.eq.s32.totalorder %s16, 1
    %p60 = por %p58, %p59
    %p62 = scmp.ne.s32.totalorder %s47, %s61
    %p63 = scmp.eq.s32.totalorder %s16, 0
    %p64 = por %p62, %p63
    %s66 = sadd.s32 %s65, 1
    %p69 = scmp.eq.s32.totalorder %s10, 1
    %p70 = scmp.ne.s32.totalorder %s65, %s67
    %p71 = scmp.eq.s32.totalorder %s10, 0
    %p72 = por %p70, %p71
    %p73 = scmp.ne.s32.totalorder %s65, %s67
    %p74 = scmp.eq.s32.totalorder %s15, 1
    %p75 = por %p73, %p74
    %p76 = scmp.ne.s32.totalorder %s67, %s68
    %p77 = scmp.eq.s32.totalorder %s15, 0
    %p78 = por %p76, %p77
    %p79 = scmp.ne.s32.totalorder %s67, %s68
    %p80 = scmp.eq.s32.totalorder %s16, 1
    %p81 = por %p79, %p80
    %p83 = scmp.ne.s32.totalorder %s68, %s82
    %p84 = scmp.eq.s32.totalorder %s16, 0
    %p85 = por %p83, %p84
    %s87 = sadd.s32 %s86, 1
    %p90 = scmp.eq.s32.totalorder %s10, 1
    %p91 = scmp.ne.s32.totalorder %s86, %s88
    %p92 = scmp.eq.s32.totalorder %s10, 0
    %p93 = por %p91, %p92
    %p94 = scmp.ne.s32.totalorder %s86, %s88
    %p95 = scmp.eq.s32.totalorder %s15, 1
    %p96 = por %p94, %p95
    %p97 = scmp.ne.s32.totalorder %s88, %s89
    %p98 = scmp.eq.s32.totalorder %s15, 0
    %p99 = por %p97, %p98
    %p100 = scmp.ne.s32.totalorder %s88, %s89
    %p101 = scmp.eq.s32.totalorder %s16, 1
    %p102 = por %p100, %p101
    %p104 = scmp.ne.s32.totalorder %s89, %s103
    %p105 = scmp.eq.s32.totalorder %s16, 0
    %p106 = por %p104, %p105
    %s107 = ssub.s32 %s10, %s17
    %p108 = scmp.eq.s32.totalorder %s107, 0
    %s110 = sadd.s32 %s109, 1
    %s111 = scalar_select %p108, %s109, %s110
    %p114 = pneg %p108
    %p115 = scmp.eq.s32.totalorder %s10, 1
    %p116 = por %p114, %p115
    %p117 = scmp.ne.s32.totalorder %s109, %s112
    %p118 = scmp.eq.s32.totalorder %s10, 0
    %p119 = por %p117, %p118
    %p120 = scmp.ne.s32.totalorder %s109, %s112
    %p121 = scmp.eq.s32.totalorder %s15, 1
    %p122 = por %p120, %p121
    %p123 = scmp.ne.s32.totalorder %s112, %s113
    %p124 = scmp.eq.s32.totalorder %s15, 0
    %p125 = por %p123, %p124
    %p126 = scmp.ne.s32.totalorder %s112, %s113
    %p127 = scmp.eq.s32.totalorder %s16, 1
    %p128 = por %p126, %p127
    %p130 = scmp.ne.s32.totalorder %s113, %s129
    %p131 = scmp.eq.s32.totalorder %s16, 0
    %p132 = por %p130, %p131
    %p133 = scmp.le.s32.totalorder 1, %s10
    %p134 = scmp.lt.s32.totalorder %s10, 3
    %p135 = pnand %p133, %p134
    %p136 = pneg %p135
    // Predicated region
    $region9: #{gsconv_forward.2} parent=5 // pred_check
      _
    $region10: #{gsconv_forward.2} parent=5 // pred_check_branch
      %138 = sbr.rel (%p135) target = $region12
    $region11: #{gsconv_forward.2} parent=5 // pred_region
      %s139 = ssub.s32 %s10, 1
      // Predicated region
      $region13: #{gsconv_forward.2} parent=11 // pred_check
        %p140 = pneg %p57
      $region14: #{gsconv_forward.2} parent=11 // pred_check_branch
        %142 = sbr.rel (%p140) target = $region16
      $region15: #{gsconv_forward.2} parent=11 // pred_region
        _
      $region16: #{gsconv_forward.2} parent=11 // pred_fallthru
        _
      // Predicated region
      $region17: #{gsconv_forward.2} parent=11 // pred_check
        %p143 = pneg %p78
      $region18: #{gsconv_forward.2} parent=11 // pred_check_branch
        %145 = sbr.rel (%p143) target = $region20
      $region19: #{gsconv_forward.2} parent=11 // pred_region
        _
      $region20: #{gsconv_forward.2} parent=11 // pred_fallthru
        _
      // Predicated region
      $region21: #{gsconv_forward.2} parent=11 // pred_check
        %p146 = pneg %p99
      $region22: #{gsconv_forward.2} parent=11 // pred_check_branch
        %148 = sbr.rel (%p146) target = $region24
      $region23: #{gsconv_forward.2} parent=11 // pred_region
        _
      $region24: #{gsconv_forward.2} parent=11 // pred_fallthru
        _
    $region12: #{gsconv_forward.2} parent=5 // pred_fallthru
      _
    %p149 = scmp.lt.s32.totalorder %s10, 2
    // Predicated region
    $region25: #{gsconv_forward.2} parent=5 // pred_check
      %p150 = pneg %p149
    $region26: #{gsconv_forward.2} parent=5 // pred_check_branch
      %152 = sbr.rel (%p150) target = $region28
    $region27: #{gsconv_forward.2} parent=5 // pred_region
      // Predicated region
      $region29: #{gsconv_forward.2} parent=27 // pred_check
        %p153 = pneg %p30
      $region30: #{gsconv_forward.2} parent=27 // pred_check_branch
        %155 = sbr.rel (%p153) target = $region32
      $region31: #{gsconv_forward.2} parent=27 // pred_region
        %s156 = smul.u32 32, %s10
        %p157 = scmp.lt.s32.totalorder %s156, 63
        %s158 = scalar_select %p157, %s156, 63
        %s159 = smul.addr %s158, 8
        %s160 = scalar_lea.vmem %s0, %s159
        %s161 = smul.u32 32, %s10
      $region32: #{gsconv_forward.2} parent=27 // pred_fallthru
        _
    $region28: #{gsconv_forward.2} parent=5 // pred_fallthru
      _
    %p162 = scmp.le.s32.totalorder 1, %s10
    %p163 = scmp.lt.s32.totalorder %s10, 3
    %p164 = pnand %p162, %p163
    %p165 = pneg %p164
    // Predicated region
    $region33: #{gsconv_forward.2} parent=5 // pred_check
      _
    $region34: #{gsconv_forward.2} parent=5 // pred_check_branch
      %167 = sbr.rel (%p164) target = $region36
    $region35: #{gsconv_forward.2} parent=5 // pred_region
      %s168 = ssub.s32 %s10, 1
      %s169 = smul.u32 32, %s15
      %p170 = scmp.lt.s32.totalorder %s169, 63
      %s171 = scalar_select %p170, %s169, 63
      %s172 = smul.addr %s171, 8
      %s173 = scalar_lea.vmem %s0, %s172
      %p174 = pneg %p36
      %p175 = pneg %p33
      %p176 = pneg %p57
      %p177 = pneg %p54
      %p178 = pneg %p78
      %p179 = pneg %p75
      %p180 = pneg %p99
      %p181 = pneg %p96
      %p182 = pneg %p125
      %p183 = pneg %p122
      %s184 = smul.u32 32, %s15
      %p185 = scmp.lt.s32.totalorder %s184, 63
      %s186 = scalar_select %p185, %s184, 63
      %s187 = smul.addr %s186, 8
      %s188 = scalar_lea.vmem %s4, %s187
      %s189 = smul.u32 32, %s15
      %p190 = scmp.lt.s32.totalorder %s189, 63
      %s191 = scalar_select %p190, %s189, 63
      %s192 = smul.addr %s191, 8
      %s193 = scalar_lea.vmem %s0, %s192
      %s194 = smul.u32 32, %s15
      %s195 = smul.u32 32, %s15
      %p196 = scmp.lt.s32.totalorder %s195, 63
      %s197 = scalar_select %p196, %s195, 63
      %s198 = smul.addr %s197, 8
      %s199 = scalar_lea.vmem %s4, %s198
      %s200 = smul.u32 32, %s15
      %v202 = vld [vmem:[%s193] sm:$0xff]
      %v203 = vld [vmem:[%s193 + $0x8] sm:$0xff]
      %v204 = vld [vmem:[%s193 + $0x10] sm:$0xff]
      %v205 = vld [vmem:[%s193 + $0x18] sm:$0xff]
      %v206 = vld [vmem:[%s193 + $0x20] sm:$0xff]
      %v207 = vld [vmem:[%s193 + $0x28] sm:$0xff]
      %v208 = vld [vmem:[%s193 + $0x30] sm:$0xff]
      %v209 = vld [vmem:[%s193 + $0x38] sm:$0xff]
      %v210 = vld [vmem:[%s193 + $0x40] sm:$0xff]
      %v211 = vld [vmem:[%s193 + $0x48] sm:$0xff]
      %v212 = vld [vmem:[%s193 + $0x50] sm:$0xff]
      %v213 = vld [vmem:[%s193 + $0x58] sm:$0xff]
      %v214 = vld [vmem:[%s193 + $0x60] sm:$0xff]
      %v215 = vld [vmem:[%s193 + $0x68] sm:$0xff]
      %v216 = vld [vmem:[%s193 + $0x70] sm:$0xff]
      %v217 = vld [vmem:[%s193 + $0x78] sm:$0xff]
      %v218 = vld [vmem:[%s193 + $0x80] sm:$0xff]
      %v219 = vld [vmem:[%s193 + $0x88] sm:$0xff]
      %v220 = vld [vmem:[%s193 + $0x90] sm:$0xff]
      %v221 = vld [vmem:[%s193 + $0x98] sm:$0xff]
      %v222 = vld [vmem:[%s193 + $0xa0] sm:$0xff]
      %v223 = vld [vmem:[%s193 + $0xa8] sm:$0xff]
      %v224 = vld [vmem:[%s193 + $0xb0] sm:$0xff]
      %v225 = vld [vmem:[%s193 + $0xb8] sm:$0xff]
      %v226 = vld [vmem:[%s193 + $0xc0] sm:$0xff]
      %v227 = vld [vmem:[%s193 + $0xc8] sm:$0xff]
      %v228 = vld [vmem:[%s193 + $0xd0] sm:$0xff]
      %v229 = vld [vmem:[%s193 + $0xd8] sm:$0xff]
      %v230 = vld [vmem:[%s193 + $0xe0] sm:$0xff]
      %v231 = vld [vmem:[%s193 + $0xe8] sm:$0xff]
      %v232 = vld [vmem:[%s193 + $0xf0] sm:$0xff]
      %v233 = vld [vmem:[%s193 + $0xf8] sm:$0xff]
      %v234 = vpack.c.bf16 %v203, %v202
      %v235 = vpack.c.bf16 %v205, %v204
      %v236 = vpack.c.bf16 %v207, %v206
      %v237 = vpack.c.bf16 %v209, %v208
      %v238 = vpack.c.bf16 %v211, %v210
      %v239 = vpack.c.bf16 %v213, %v212
      %v240 = vpack.c.bf16 %v215, %v214
      %v241 = vpack.c.bf16 %v217, %v216
      %v242 = vpack.c.bf16 %v219, %v218
      %v243 = vpack.c.bf16 %v221, %v220
      %v244 = vpack.c.bf16 %v223, %v222
      %v245 = vpack.c.bf16 %v225, %v224
      %v246 = vpack.c.bf16 %v227, %v226
      %v247 = vpack.c.bf16 %v229, %v228
      %v248 = vpack.c.bf16 %v231, %v230
      %v249 = vpack.c.bf16 %v233, %v232
      %v250 = vld [vmem:[%s1] sm:$0xf]
      %vm251 = vcmask 64512
      %v253 = vsel %vm251, %v234, 0
      %v256 = vsel %vm251, %v235, 0
      %v259 = vsel %vm251, %v236, 0
      %v262 = vsel %vm251, %v237, 0
      %v265 = vsel %vm251, %v238, 0
      %v268 = vsel %vm251, %v239, 0
      %v271 = vsel %vm251, %v240, 0
      %v274 = vsel %vm251, %v241, 0
      %v277 = vsel %vm251, %v242, 0
      %v280 = vsel %vm251, %v243, 0
      %v283 = vsel %vm251, %v244, 0
      %v286 = vsel %vm251, %v245, 0
      %v289 = vsel %vm251, %v246, 0
      %v292 = vsel %vm251, %v247, 0
      %v295 = vsel %vm251, %v248, 0
      %v298 = vsel %vm251, %v249, 0
      %vm300 = vcmask 1043456
      %v302 = vsel %vm300, %v250, 0
      %304 = vmatprep.subr.bf16.mxu0 0
      %305 = vmatpush1.bf16.msra.mxu0 0
      %306 = vmatprep.subr.bf16.mxu0 0
      %307 = vmatpush1.bf16.msra.mxu0 0
      %308 = vmatprep.subr.bf16.mxu0 0
      %309 = vmatpush1.bf16.msra.mxu0 0
      %310 = vmatprep.subr.bf16.mxu0 0
      %311 = vmatpush1.bf16.msra.mxu0 0
      %312 = vmatprep.subr.bf16.mxu0 0
      %313 = vmatpush1.bf16.msra.mxu0 0
      %314 = vmatprep.subr.bf16.mxu0 0
      %315 = vmatpush1.bf16.msra.mxu0 0
      %316 = vmatprep.subr.bf16.mxu0 0
      %317 = vmatpush1.bf16.msra.mxu0 0
      %318 = vmatprep.subr.bf16.mxu0 0
      %319 = vmatpush1.bf16.msra.mxu0 %v302
      %320 = vmatprep.subr.bf16.mxu0 0
      %321 = vmatpush2.bf16.msra.mxu0 0
      %322 = vmatprep.subr.bf16.mxu0 0
      %323 = vmatpush2.bf16.msra.mxu0 0
      %324 = vmatprep.subr.bf16.mxu0 0
      %325 = vmatpush2.bf16.msra.mxu0 0
      %326 = vmatprep.subr.bf16.mxu0 0
      %327 = vmatpush2.bf16.msra.mxu0 0
      %328 = vmatprep.subr.bf16.mxu0 0
      %329 = vmatpush2.bf16.msra.mxu0 0
      %330 = vmatprep.subr.bf16.mxu0 0
      %331 = vmatpush2.bf16.msra.mxu0 0
      %332 = vmatprep.subr.bf16.mxu0 0
      %333 = vmatpush2.bf16.msra.mxu0 0
      %334 = vmatprep.subr.bf16.mxu0 0
      %335 = vmatpush2.bf16.msra.mxu0 0
      %336 = vmatprep.mubr.bf16.mxu0 0
      %337 = vmatmul.mubr.bf16.gmra.mxu0 %v253
      %v338 = vpop.f32.mrf.mxu0
      %v339 = vadd.f32 0.0, %v338
      %v340 = vpop.f32.mrf.mxu0
      %v341 = vpop.f32.mrf.mxu0
      %v342 = vadd.f32 0.0, %v341
      %v343 = vpop.f32.mrf.mxu0
      %344 = vmatprep.mubr.bf16.mxu0 0
      %345 = vmatmul.mubr.bf16.gmra.mxu0 %v256
      %v346 = vpop.f32.mrf.mxu0
      %v347 = vadd.f32 0.0, %v346
      %v348 = vpop.f32.mrf.mxu0
      %v349 = vpop.f32.mrf.mxu0
      %v350 = vadd.f32 0.0, %v349
      %v351 = vpop.f32.mrf.mxu0
      %352 = vmatprep.mubr.bf16.mxu0 0
      %353 = vmatmul.mubr.bf16.gmra.mxu0 %v259
      %v354 = vpop.f32.mrf.mxu0
      %v355 = vadd.f32 0.0, %v354
      %v356 = vpop.f32.mrf.mxu0
      %v357 = vpop.f32.mrf.mxu0
      %v358 = vadd.f32 0.0, %v357
      %v359 = vpop.f32.mrf.mxu0
      %360 = vmatprep.mubr.bf16.mxu0 0
      %361 = vmatmul.mubr.bf16.gmra.mxu0 %v262
      %v362 = vpop.f32.mrf.mxu0
      %v363 = vadd.f32 0.0, %v362
      %v364 = vpop.f32.mrf.mxu0
      %v365 = vpop.f32.mrf.mxu0
      %v366 = vadd.f32 0.0, %v365
      %v367 = vpop.f32.mrf.mxu0
      %368 = vmatprep.mubr.bf16.mxu0 0
      %369 = vmatmul.mubr.bf16.gmra.mxu0 %v265
      %v370 = vpop.f32.mrf.mxu0
      %v371 = vadd.f32 0.0, %v370
      %v372 = vpop.f32.mrf.mxu0
      %v373 = vpop.f32.mrf.mxu0
      %v374 = vadd.f32 0.0, %v373
      %v375 = vpop.f32.mrf.mxu0
      %376 = vmatprep.mubr.bf16.mxu0 0
      %377 = vmatmul.mubr.bf16.gmra.mxu0 %v268
      %v378 = vpop.f32.mrf.mxu0
      %v379 = vadd.f32 0.0, %v378
      %v380 = vpop.f32.mrf.mxu0
      %v381 = vpop.f32.mrf.mxu0
      %v382 = vadd.f32 0.0, %v381
      %v383 = vpop.f32.mrf.mxu0
      %384 = vmatprep.mubr.bf16.mxu0 0
      %385 = vmatmul.mubr.bf16.gmra.mxu0 %v271
      %v386 = vpop.f32.mrf.mxu0
      %v387 = vadd.f32 0.0, %v386
      %v388 = vpop.f32.mrf.mxu0
      %v389 = vpop.f32.mrf.mxu0
      %v390 = vadd.f32 0.0, %v389
      %v391 = vpop.f32.mrf.mxu0
      %392 = vmatprep.mubr.bf16.mxu0 0
      %393 = vmatmul.mubr.bf16.gmra.mxu0 %v274
      %v394 = vpop.f32.mrf.mxu0
      %v395 = vadd.f32 0.0, %v394
      %v396 = vpop.f32.mrf.mxu0
      %v397 = vpop.f32.mrf.mxu0
      %v398 = vadd.f32 0.0, %v397
      %v399 = vpop.f32.mrf.mxu0
      %400 = vmatprep.mubr.bf16.mxu0 0
      %401 = vmatmul.mubr.bf16.gmra.mxu0 %v277
      %v402 = vpop.f32.mrf.mxu0
      %v403 = vadd.f32 0.0, %v402
      %v404 = vpop.f32.mrf.mxu0
      %v405 = vpop.f32.mrf.mxu0
      %v406 = vadd.f32 0.0, %v405
      %v407 = vpop.f32.mrf.mxu0
      %408 = vmatprep.mubr.bf16.mxu0 0
      %409 = vmatmul.mubr.bf16.gmra.mxu0 %v280
      %v410 = vpop.f32.mrf.mxu0
      %v411 = vadd.f32 0.0, %v410
      %v412 = vpop.f32.mrf.mxu0
      %v413 = vpop.f32.mrf.mxu0
      %v414 = vadd.f32 0.0, %v413
      %v415 = vpop.f32.mrf.mxu0
      %416 = vmatprep.mubr.bf16.mxu0 0
      %417 = vmatmul.mubr.bf16.gmra.mxu0 %v283
      %v418 = vpop.f32.mrf.mxu0
      %v419 = vadd.f32 0.0, %v418
      %v420 = vpop.f32.mrf.mxu0
      %v421 = vpop.f32.mrf.mxu0
      %v422 = vadd.f32 0.0, %v421
      %v423 = vpop.f32.mrf.mxu0
      %424 = vmatprep.mubr.bf16.mxu0 0
      %425 = vmatmul.mubr.bf16.gmra.mxu0 %v286
      %v426 = vpop.f32.mrf.mxu0
      %v427 = vadd.f32 0.0, %v426
      %v428 = vpop.f32.mrf.mxu0
      %v429 = vpop.f32.mrf.mxu0
      %v430 = vadd.f32 0.0, %v429
      %v431 = vpop.f32.mrf.mxu0
      %432 = vmatprep.mubr.bf16.mxu0 0
      %433 = vmatmul.mubr.bf16.gmra.mxu0 %v289
      %v434 = vpop.f32.mrf.mxu0
      %v435 = vadd.f32 0.0, %v434
      %v436 = vpop.f32.mrf.mxu0
      %v437 = vpop.f32.mrf.mxu0
      %v438 = vadd.f32 0.0, %v437
      %v439 = vpop.f32.mrf.mxu0
      %440 = vmatprep.mubr.bf16.mxu0 0
      %441 = vmatmul.mubr.bf16.gmra.mxu0 %v292
      %v442 = vpop.f32.mrf.mxu0
      %v443 = vadd.f32 0.0, %v442
      %v444 = vpop.f32.mrf.mxu0
      %v445 = vpop.f32.mrf.mxu0
      %v446 = vadd.f32 0.0, %v445
      %v447 = vpop.f32.mrf.mxu0
      %448 = vmatprep.mubr.bf16.mxu0 0
      %449 = vmatmul.mubr.bf16.gmra.mxu0 %v295
      %v450 = vpop.f32.mrf.mxu0
      %v451 = vadd.f32 0.0, %v450
      %v452 = vpop.f32.mrf.mxu0
      %v453 = vpop.f32.mrf.mxu0
      %v454 = vadd.f32 0.0, %v453
      %v455 = vpop.f32.mrf.mxu0
      %456 = vmatprep.mubr.bf16.mxu0 0
      %457 = vmatmul.mubr.bf16.gmra.mxu0 %v298
      %v458 = vpop.f32.mrf.mxu0
      %v459 = vadd.f32 0.0, %v458
      %v460 = vpop.f32.mrf.mxu0
      %v461 = vpop.f32.mrf.mxu0
      %v462 = vadd.f32 0.0, %v461
      %v463 = vpop.f32.mrf.mxu0
      %464 = vdwg.mxu0
      %v465 = vld [vmem:[%s2] sm:$0x1]
      %v467 = vlaneseq
      %v468 = vshrl.u32 %v467, 7
      %v469 = vsub.s32 0, %v468
      %v470 = vrot.slane %v465, %v469
      %v472 = vmul.f32 %v339, %v470
      %v473 = vmul.f32 %v342, %v470
      %v474 = vmul.f32 %v347, %v470
      %v475 = vmul.f32 %v350, %v470
      %v476 = vmul.f32 %v355, %v470
      %v477 = vmul.f32 %v358, %v470
      %v478 = vmul.f32 %v363, %v470
      %v479 = vmul.f32 %v366, %v470
      %v480 = vmul.f32 %v371, %v470
      %v481 = vmul.f32 %v374, %v470
      %v482 = vmul.f32 %v379, %v470
      %v483 = vmul.f32 %v382, %v470
      %v484 = vmul.f32 %v387, %v470
      %v485 = vmul.f32 %v390, %v470
      %v486 = vmul.f32 %v395, %v470
      %v487 = vmul.f32 %v398, %v470
      %v488 = vmul.f32 %v403, %v470
      %v489 = vmul.f32 %v406, %v470
      %v490 = vmul.f32 %v411, %v470
      %v491 = vmul.f32 %v414, %v470
      %v492 = vmul.f32 %v419, %v470
      %v493 = vmul.f32 %v422, %v470
      %v494 = vmul.f32 %v427, %v470
      %v495 = vmul.f32 %v430, %v470
      %v496 = vmul.f32 %v435, %v470
      %v497 = vmul.f32 %v438, %v470
      %v498 = vmul.f32 %v443, %v470
      %v499 = vmul.f32 %v446, %v470
      %v500 = vmul.f32 %v451, %v470
      %v501 = vmul.f32 %v454, %v470
      %v502 = vmul.f32 %v459, %v470
      %v503 = vmul.f32 %v462, %v470
      %v504 = vld [vmem:[%s3] sm:$0x1]
      %v506 = vlaneseq
      %v507 = vshrl.u32 %v506, 7
      %v508 = vsub.s32 0, %v507
      %v509 = vrot.slane %v504, %v508
      %v511 = vadd.f32 %v472, %v509
      %v512 = vadd.f32 %v473, %v509
      %v513 = vadd.f32 %v474, %v509
      %v514 = vadd.f32 %v475, %v509
      %v515 = vadd.f32 %v476, %v509
      %v516 = vadd.f32 %v477, %v509
      %v517 = vadd.f32 %v478, %v509
      %v518 = vadd.f32 %v479, %v509
      %v519 = vadd.f32 %v480, %v509
      %v520 = vadd.f32 %v481, %v509
      %v521 = vadd.f32 %v482, %v509
      %v522 = vadd.f32 %v483, %v509
      %v523 = vadd.f32 %v484, %v509
      %v524 = vadd.f32 %v485, %v509
      %v525 = vadd.f32 %v486, %v509
      %v526 = vadd.f32 %v487, %v509
      %v527 = vadd.f32 %v488, %v509
      %v528 = vadd.f32 %v489, %v509
      %v529 = vadd.f32 %v490, %v509
      %v530 = vadd.f32 %v491, %v509
      %v531 = vadd.f32 %v492, %v509
      %v532 = vadd.f32 %v493, %v509
      %v533 = vadd.f32 %v494, %v509
      %v534 = vadd.f32 %v495, %v509
      %v535 = vadd.f32 %v496, %v509
      %v536 = vadd.f32 %v497, %v509
      %v537 = vadd.f32 %v498, %v509
      %v538 = vadd.f32 %v499, %v509
      %v539 = vadd.f32 %v500, %v509
      %v540 = vadd.f32 %v501, %v509
      %v541 = vadd.f32 %v502, %v509
      %v542 = vadd.f32 %v503, %v509
      %v543 = vmin.f32 %v511, 25.0
      %v544 = vmin.f32 %v512, 25.0
      %v545 = vmin.f32 %v513, 25.0
      %v546 = vmin.f32 %v514, 25.0
      %v547 = vmin.f32 %v515, 25.0
      %v548 = vmin.f32 %v516, 25.0
      %v549 = vmin.f32 %v517, 25.0
      %v550 = vmin.f32 %v518, 25.0
      %v551 = vmin.f32 %v519, 25.0
      %v552 = vmin.f32 %v520, 25.0
      %v553 = vmin.f32 %v521, 25.0
      %v554 = vmin.f32 %v522, 25.0
      %v555 = vmin.f32 %v523, 25.0
      %v556 = vmin.f32 %v524, 25.0
      %v557 = vmin.f32 %v525, 25.0
      %v558 = vmin.f32 %v526, 25.0
      %v559 = vmin.f32 %v527, 25.0
      %v560 = vmin.f32 %v528, 25.0
      %v561 = vmin.f32 %v529, 25.0
      %v562 = vmin.f32 %v530, 25.0
      %v563 = vmin.f32 %v531, 25.0
      %v564 = vmin.f32 %v532, 25.0
      %v565 = vmin.f32 %v533, 25.0
      %v566 = vmin.f32 %v534, 25.0
      %v567 = vmin.f32 %v535, 25.0
      %v568 = vmin.f32 %v536, 25.0
      %v569 = vmin.f32 %v537, 25.0
      %v570 = vmin.f32 %v538, 25.0
      %v571 = vmin.f32 %v539, 25.0
      %v572 = vmin.f32 %v540, 25.0
      %v573 = vmin.f32 %v541, 25.0
      %v574 = vmin.f32 %v542, 25.0
      %v575 = vmul.f32 %v543, 1.442695
      %v576 = vpow.pop %v575
      %v577 = vmul.f32 %v544, 1.442695
      %v578 = vpow.pop %v577
      %v579 = vmul.f32 %v545, 1.442695
      %v580 = vpow.pop %v579
      %v581 = vmul.f32 %v546, 1.442695
      %v582 = vpow.pop %v581
      %v583 = vmul.f32 %v547, 1.442695
      %v584 = vpow.pop %v583
      %v585 = vmul.f32 %v548, 1.442695
      %v586 = vpow.pop %v585
      %v587 = vmul.f32 %v549, 1.442695
      %v588 = vpow.pop %v587
      %v589 = vmul.f32 %v550, 1.442695
      %v590 = vpow.pop %v589
      %v591 = vmul.f32 %v551, 1.442695
      %v592 = vpow.pop %v591
      %v593 = vmul.f32 %v552, 1.442695
      %v594 = vpow.pop %v593
      %v595 = vmul.f32 %v553, 1.442695
      %v596 = vpow.pop %v595
      %v597 = vmul.f32 %v554, 1.442695
      %v598 = vpow.pop %v597
      %v599 = vmul.f32 %v555, 1.442695
      %v600 = vpow.pop %v599
      %v601 = vmul.f32 %v556, 1.442695
      %v602 = vpow.pop %v601
      %v603 = vmul.f32 %v557, 1.442695
      %v604 = vpow.pop %v603
      %v605 = vmul.f32 %v558, 1.442695
      %v606 = vpow.pop %v605
      %v607 = vmul.f32 %v559, 1.442695
      %v608 = vpow.pop %v607
      %v609 = vmul.f32 %v560, 1.442695
      %v610 = vpow.pop %v609
      %v611 = vmul.f32 %v561, 1.442695
      %v612 = vpow.pop %v611
      %v613 = vmul.f32 %v562, 1.442695
      %v614 = vpow.pop %v613
      %v615 = vmul.f32 %v563, 1.442695
      %v616 = vpow.pop %v615
      %v617 = vmul.f32 %v564, 1.442695
      %v618 = vpow.pop %v617
      %v619 = vmul.f32 %v565, 1.442695
      %v620 = vpow.pop %v619
      %v621 = vmul.f32 %v566, 1.442695
      %v622 = vpow.pop %v621
      %v623 = vmul.f32 %v567, 1.442695
      %v624 = vpow.pop %v623
      %v625 = vmul.f32 %v568, 1.442695
      %v626 = vpow.pop %v625
      %v627 = vmul.f32 %v569, 1.442695
      %v628 = vpow.pop %v627
      %v629 = vmul.f32 %v570, 1.442695
      %v630 = vpow.pop %v629
      %v631 = vmul.f32 %v571, 1.442695
      %v632 = vpow.pop %v631
      %v633 = vmul.f32 %v572, 1.442695
      %v634 = vpow.pop %v633
      %v635 = vmul.f32 %v573, 1.442695
      %v636 = vpow.pop %v635
      %v637 = vmul.f32 %v574, 1.442695
      %v638 = vpow.pop %v637
      %v639 = vadd.f32 %v576, 1.0
      %v640 = vadd.f32 %v578, 1.0
      %v641 = vadd.f32 %v580, 1.0
      %v642 = vadd.f32 %v582, 1.0
      %v643 = vadd.f32 %v584, 1.0
      %v644 = vadd.f32 %v586, 1.0
      %v645 = vadd.f32 %v588, 1.0
      %v646 = vadd.f32 %v590, 1.0
      %v647 = vadd.f32 %v592, 1.0
      %v648 = vadd.f32 %v594, 1.0
      %v649 = vadd.f32 %v596, 1.0
      %v650 = vadd.f32 %v598, 1.0
      %v651 = vadd.f32 %v600, 1.0
      %v652 = vadd.f32 %v602, 1.0
      %v653 = vadd.f32 %v604, 1.0
      %v654 = vadd.f32 %v606, 1.0
      %v655 = vadd.f32 %v608, 1.0
      %v656 = vadd.f32 %v610, 1.0
      %v657 = vadd.f32 %v612, 1.0
      %v658 = vadd.f32 %v614, 1.0
      %v659 = vadd.f32 %v616, 1.0
      %v660 = vadd.f32 %v618, 1.0
      %v661 = vadd.f32 %v620, 1.0
      %v662 = vadd.f32 %v622, 1.0
      %v663 = vadd.f32 %v624, 1.0
      %v664 = vadd.f32 %v626, 1.0
      %v665 = vadd.f32 %v628, 1.0
      %v666 = vadd.f32 %v630, 1.0
      %v667 = vadd.f32 %v632, 1.0
      %v668 = vadd.f32 %v634, 1.0
      %v669 = vadd.f32 %v636, 1.0
      %v670 = vadd.f32 %v638, 1.0
      %v671 = vmul.f32 %v639, %v639
      %v672 = vmul.f32 %v640, %v640
      %v673 = vmul.f32 %v641, %v641
      %v674 = vmul.f32 %v642, %v642
      %v675 = vmul.f32 %v643, %v643
      %v676 = vmul.f32 %v644, %v644
      %v677 = vmul.f32 %v645, %v645
      %v678 = vmul.f32 %v646, %v646
      %v679 = vmul.f32 %v647, %v647
      %v680 = vmul.f32 %v648, %v648
      %v681 = vmul.f32 %v649, %v649
      %v682 = vmul.f32 %v650, %v650
      %v683 = vmul.f32 %v651, %v651
      %v684 = vmul.f32 %v652, %v652
      %v685 = vmul.f32 %v653, %v653
      %v686 = vmul.f32 %v654, %v654
      %v687 = vmul.f32 %v655, %v655
      %v688 = vmul.f32 %v656, %v656
      %v689 = vmul.f32 %v657, %v657
      %v690 = vmul.f32 %v658, %v658
      %v691 = vmul.f32 %v659, %v659
      %v692 = vmul.f32 %v660, %v660
      %v693 = vmul.f32 %v661, %v661
      %v694 = vmul.f32 %v662, %v662
      %v695 = vmul.f32 %v663, %v663
      %v696 = vmul.f32 %v664, %v664
      %v697 = vmul.f32 %v665, %v665
      %v698 = vmul.f32 %v666, %v666
      %v699 = vmul.f32 %v667, %v667
      %v700 = vmul.f32 %v668, %v668
      %v701 = vmul.f32 %v669, %v669
      %v702 = vmul.f32 %v670, %v670
      %v703 = vadd.f32 %v671, 1.0
      %v704 = vadd.f32 %v672, 1.0
      %v705 = vadd.f32 %v673, 1.0
      %v706 = vadd.f32 %v674, 1.0
      %v707 = vadd.f32 %v675, 1.0
      %v708 = vadd.f32 %v676, 1.0
      %v709 = vadd.f32 %v677, 1.0
      %v710 = vadd.f32 %v678, 1.0
      %v711 = vadd.f32 %v679, 1.0
      %v712 = vadd.f32 %v680, 1.0
      %v713 = vadd.f32 %v681, 1.0
      %v714 = vadd.f32 %v682, 1.0
      %v715 = vadd.f32 %v683, 1.0
      %v716 = vadd.f32 %v684, 1.0
      %v717 = vadd.f32 %v685, 1.0
      %v718 = vadd.f32 %v686, 1.0
      %v719 = vadd.f32 %v687, 1.0
      %v720 = vadd.f32 %v688, 1.0
      %v721 = vadd.f32 %v689, 1.0
      %v722 = vadd.f32 %v690, 1.0
      %v723 = vadd.f32 %v691, 1.0
      %v724 = vadd.f32 %v692, 1.0
      %v725 = vadd.f32 %v693, 1.0
      %v726 = vadd.f32 %v694, 1.0
      %v727 = vadd.f32 %v695, 1.0
      %v728 = vadd.f32 %v696, 1.0
      %v729 = vadd.f32 %v697, 1.0
      %v730 = vadd.f32 %v698, 1.0
      %v731 = vadd.f32 %v699, 1.0
      %v732 = vadd.f32 %v700, 1.0
      %v733 = vadd.f32 %v701, 1.0
      %v734 = vadd.f32 %v702, 1.0
      %v735 = vrcp.pop %v703
      %v736 = vrcp.pop %v704
      %v737 = vrcp.pop %v705
      %v738 = vrcp.pop %v706
      %v739 = vrcp.pop %v707
      %v740 = vrcp.pop %v708
      %v741 = vrcp.pop %v709
      %v742 = vrcp.pop %v710
      %v743 = vrcp.pop %v711
      %v744 = vrcp.pop %v712
      %v745 = vrcp.pop %v713
      %v746 = vrcp.pop %v714
      %v747 = vrcp.pop %v715
      %v748 = vrcp.pop %v716
      %v749 = vrcp.pop %v717
      %v750 = vrcp.pop %v718
      %v751 = vrcp.pop %v719
      %v752 = vrcp.pop %v720
      %v753 = vrcp.pop %v721
      %v754 = vrcp.pop %v722
      %v755 = vrcp.pop %v723
      %v756 = vrcp.pop %v724
      %v757 = vrcp.pop %v725
      %v758 = vrcp.pop %v726
      %v759 = vrcp.pop %v727
      %v760 = vrcp.pop %v728
      %v761 = vrcp.pop %v729
      %v762 = vrcp.pop %v730
      %v763 = vrcp.pop %v731
      %v764 = vrcp.pop %v732
      %v765 = vrcp.pop %v733
      %v766 = vrcp.pop %v734
      %v767 = vmul.f32 %v735, 2.0
      %v768 = vmul.f32 %v736, 2.0
      %v769 = vmul.f32 %v737, 2.0
      %v770 = vmul.f32 %v738, 2.0
      %v771 = vmul.f32 %v739, 2.0
      %v772 = vmul.f32 %v740, 2.0
      %v773 = vmul.f32 %v741, 2.0
      %v774 = vmul.f32 %v742, 2.0
      %v775 = vmul.f32 %v743, 2.0
      %v776 = vmul.f32 %v744, 2.0
      %v777 = vmul.f32 %v745, 2.0
      %v778 = vmul.f32 %v746, 2.0
      %v779 = vmul.f32 %v747, 2.0
      %v780 = vmul.f32 %v748, 2.0
      %v781 = vmul.f32 %v749, 2.0
      %v782 = vmul.f32 %v750, 2.0
      %v783 = vmul.f32 %v751, 2.0
      %v784 = vmul.f32 %v752, 2.0
      %v785 = vmul.f32 %v753, 2.0
      %v786 = vmul.f32 %v754, 2.0
      %v787 = vmul.f32 %v755, 2.0
      %v788 = vmul.f32 %v756, 2.0
      %v789 = vmul.f32 %v757, 2.0
      %v790 = vmul.f32 %v758, 2.0
      %v791 = vmul.f32 %v759, 2.0
      %v792 = vmul.f32 %v760, 2.0
      %v793 = vmul.f32 %v761, 2.0
      %v794 = vmul.f32 %v762, 2.0
      %v795 = vmul.f32 %v763, 2.0
      %v796 = vmul.f32 %v764, 2.0
      %v797 = vmul.f32 %v765, 2.0
      %v798 = vmul.f32 %v766, 2.0
      %v799 = vsub.f32 1.0, %v767
      %v800 = vsub.f32 1.0, %v768
      %v801 = vsub.f32 1.0, %v769
      %v802 = vsub.f32 1.0, %v770
      %v803 = vsub.f32 1.0, %v771
      %v804 = vsub.f32 1.0, %v772
      %v805 = vsub.f32 1.0, %v773
      %v806 = vsub.f32 1.0, %v774
      %v807 = vsub.f32 1.0, %v775
      %v808 = vsub.f32 1.0, %v776
      %v809 = vsub.f32 1.0, %v777
      %v810 = vsub.f32 1.0, %v778
      %v811 = vsub.f32 1.0, %v779
      %v812 = vsub.f32 1.0, %v780
      %v813 = vsub.f32 1.0, %v781
      %v814 = vsub.f32 1.0, %v782
      %v815 = vsub.f32 1.0, %v783
      %v816 = vsub.f32 1.0, %v784
      %v817 = vsub.f32 1.0, %v785
      %v818 = vsub.f32 1.0, %v786
      %v819 = vsub.f32 1.0, %v787
      %v820 = vsub.f32 1.0, %v788
      %v821 = vsub.f32 1.0, %v789
      %v822 = vsub.f32 1.0, %v790
      %v823 = vsub.f32 1.0, %v791
      %v824 = vsub.f32 1.0, %v792
      %v825 = vsub.f32 1.0, %v793
      %v826 = vsub.f32 1.0, %v794
      %v827 = vsub.f32 1.0, %v795
      %v828 = vsub.f32 1.0, %v796
      %v829 = vsub.f32 1.0, %v797
      %v830 = vsub.f32 1.0, %v798
      %v831 = vmul.f32 %v511, %v799
      %v832 = vmul.f32 %v512, %v800
      %v833 = vmul.f32 %v513, %v801
      %v834 = vmul.f32 %v514, %v802
      %v835 = vmul.f32 %v515, %v803
      %v836 = vmul.f32 %v516, %v804
      %v837 = vmul.f32 %v517, %v805
      %v838 = vmul.f32 %v518, %v806
      %v839 = vmul.f32 %v519, %v807
      %v840 = vmul.f32 %v520, %v808
      %v841 = vmul.f32 %v521, %v809
      %v842 = vmul.f32 %v522, %v810
      %v843 = vmul.f32 %v523, %v811
      %v844 = vmul.f32 %v524, %v812
      %v845 = vmul.f32 %v525, %v813
      %v846 = vmul.f32 %v526, %v814
      %v847 = vmul.f32 %v527, %v815
      %v848 = vmul.f32 %v528, %v816
      %v849 = vmul.f32 %v529, %v817
      %v850 = vmul.f32 %v530, %v818
      %v851 = vmul.f32 %v531, %v819
      %v852 = vmul.f32 %v532, %v820
      %v853 = vmul.f32 %v533, %v821
      %v854 = vmul.f32 %v534, %v822
      %v855 = vmul.f32 %v535, %v823
      %v856 = vmul.f32 %v536, %v824
      %v857 = vmul.f32 %v537, %v825
      %v858 = vmul.f32 %v538, %v826
      %v859 = vmul.f32 %v539, %v827
      %v860 = vmul.f32 %v540, %v828
      %v861 = vmul.f32 %v541, %v829
      %v862 = vmul.f32 %v542, %v830
      %863 = vst.msk [vmem:[%s199] sm:$0xff] %vm251, %v831
      %864 = vst.msk [vmem:[%s199 + $0x8] sm:$0xff] %vm251, %v832
      %865 = vst.msk [vmem:[%s199 + $0x10] sm:$0xff] %vm251, %v833
      %866 = vst.msk [vmem:[%s199 + $0x18] sm:$0xff] %vm251, %v834
      %867 = vst.msk [vmem:[%s199 + $0x20] sm:$0xff] %vm251, %v835
      %868 = vst.msk [vmem:[%s199 + $0x28] sm:$0xff] %vm251, %v836
      %869 = vst.msk [vmem:[%s199 + $0x30] sm:$0xff] %vm251, %v837
      %870 = vst.msk [vmem:[%s199 + $0x38] sm:$0xff] %vm251, %v838
      %871 = vst.msk [vmem:[%s199 + $0x40] sm:$0xff] %vm251, %v839
      %872 = vst.msk [vmem:[%s199 + $0x48] sm:$0xff] %vm251, %v840
      %873 = vst.msk [vmem:[%s199 + $0x50] sm:$0xff] %vm251, %v841
      %874 = vst.msk [vmem:[%s199 + $0x58] sm:$0xff] %vm251, %v842
      %875 = vst.msk [vmem:[%s199 + $0x60] sm:$0xff] %vm251, %v843
      %876 = vst.msk [vmem:[%s199 + $0x68] sm:$0xff] %vm251, %v844
      %877 = vst.msk [vmem:[%s199 + $0x70] sm:$0xff] %vm251, %v845
      %878 = vst.msk [vmem:[%s199 + $0x78] sm:$0xff] %vm251, %v846
      %879 = vst.msk [vmem:[%s199 + $0x80] sm:$0xff] %vm251, %v847
      %880 = vst.msk [vmem:[%s199 + $0x88] sm:$0xff] %vm251, %v848
      %881 = vst.msk [vmem:[%s199 + $0x90] sm:$0xff] %vm251, %v849
      %882 = vst.msk [vmem:[%s199 + $0x98] sm:$0xff] %vm251, %v850
      %883 = vst.msk [vmem:[%s199 + $0xa0] sm:$0xff] %vm251, %v851
      %884 = vst.msk [vmem:[%s199 + $0xa8] sm:$0xff] %vm251, %v852
      %885 = vst.msk [vmem:[%s199 + $0xb0] sm:$0xff] %vm251, %v853
      %886 = vst.msk [vmem:[%s199 + $0xb8] sm:$0xff] %vm251, %v854
      %887 = vst.msk [vmem:[%s199 + $0xc0] sm:$0xff] %vm251, %v855
      %888 = vst.msk [vmem:[%s199 + $0xc8] sm:$0xff] %vm251, %v856
      %889 = vst.msk [vmem:[%s199 + $0xd0] sm:$0xff] %vm251, %v857
      %890 = vst.msk [vmem:[%s199 + $0xd8] sm:$0xff] %vm251, %v858
      %891 = vst.msk [vmem:[%s199 + $0xe0] sm:$0xff] %vm251, %v859
      %892 = vst.msk [vmem:[%s199 + $0xe8] sm:$0xff] %vm251, %v860
      %893 = vst.msk [vmem:[%s199 + $0xf0] sm:$0xff] %vm251, %v861
      %894 = vst.msk [vmem:[%s199 + $0xf8] sm:$0xff] %vm251, %v862
      %s895 = smul.u32 32, %s15
      %p896 = scmp.lt.s32.totalorder %s895, 63
      %s897 = scalar_select %p896, %s895, 63
      %s898 = smul.addr %s897, 8
      %s899 = scalar_lea.vmem %s4, %s898
      // Predicated region
      $region37: #{gsconv_forward.2} parent=35 // pred_check
        %p900 = pneg %p122
      $region38: #{gsconv_forward.2} parent=35 // pred_check_branch
        %902 = sbr.rel (%p900) target = $region40
      $region39: #{gsconv_forward.2} parent=35 // pred_region
        %s903 = smul.u32 32, %s15
      $region40: #{gsconv_forward.2} parent=35 // pred_fallthru
        _
    $region36: #{gsconv_forward.2} parent=5 // pred_fallthru
      _
    %p904 = scmp.le.s32.totalorder 2, %s10
    // Predicated region
    $region41: #{gsconv_forward.2} parent=5 // pred_check
      %p905 = pneg %p904
    $region42: #{gsconv_forward.2} parent=5 // pred_check_branch
      %907 = sbr.rel (%p905) target = $region44
    $region43: #{gsconv_forward.2} parent=5 // pred_region
      %s908 = ssub.s32 %s10, 2
      // Predicated region
      $region45: #{gsconv_forward.2} parent=43 // pred_check
        %p909 = pneg %p128
      $region46: #{gsconv_forward.2} parent=43 // pred_check_branch
        %911 = sbr.rel (%p909) target = $region48
      $region47: #{gsconv_forward.2} parent=43 // pred_region
        %s912 = smul.u32 32, %s16
        %p913 = scmp.lt.s32.totalorder %s912, 63
        %s914 = scalar_select %p913, %s912, 63
        %s915 = smul.addr %s914, 8
        %s916 = scalar_lea.vmem %s4, %s915
      $region48: #{gsconv_forward.2} parent=43 // pred_fallthru
        _
    $region44: #{gsconv_forward.2} parent=5 // pred_fallthru
      _
  $region6: #{gsconv_forward.2} parent=0 // loop_footer
    %s14 = sadd.s32 1, %s10
  $region7: #{gsconv_forward.2} parent=0 // loop_footer_branch
    %9 = sbr.rel target = $region3
  $region8: #{gsconv_forward.2} parent=0 // loop_exit
    _

</llo_original>
